<compile_context>
chip_gen: v7x
topology: tpu7x:2x2x1
jax: 0.10.0
libtpu: 0.0.40
codegen_flags: <defaults>
</compile_context>

<pallas_src>
import jax
import jax.numpy as jnp
from jax.experimental import pallas as pl
from jax.experimental.pallas import tpu as pltpu


def _round_up(x, m):
    return ((x + m - 1) // m) * m


def tropical_minrelu_kernel(x_ref, wt_ref, o_ref):
    """One (i, j, k) grid step of the tropical min-plus product.

    x_ref : (tm, tk)  tile of (padded) X
    wt_ref: (tk, tn)  tile of (padded) W^T   -- out_features on lanes
    o_ref : (tm, tn)  f32 output tile; its BlockSpec is k-invariant, so the
            tile stays resident in VMEM across the k grid axis and doubles as
            the running-min accumulator (no separate scratch).
    """
    k = pl.program_id(2)

    @pl.when(k == 0)
    def _():
        o_ref[...] = jnp.full(o_ref.shape, jnp.inf, o_ref.dtype)

    # "MinReLu" masking: negative inputs are knocked out of the min (-> +inf).
    # Hoisted: one cmp+select per X element, outside the k-inner loop.
    x = x_ref[...]                                   # (tm, tk)
    xm = jnp.where(x < 0.0, jnp.inf, x)

    acc = o_ref[...]                                 # (tm, tn) running min
    tk = x_ref.shape[1]

    # k-inner loop over the tile: everything stays in rank-2 (tm, 1)/(1, tn)/
    # (tm, tn) vregs -- no (tm, tn, tk) broadcast intermediate and no
    # cross-lane (XLU) reduction; the add+min semiring runs on the VPU.
    # All slices use *static* indices (lowering-safe on the lane dimension);
    # tk is kept at 128 so the unrolled body stays small while large K is
    # handled by the k grid axis.
    for kk in range(tk):
        s = xm[:, kk:kk + 1] + wt_ref[kk:kk + 1, :]  # (tm, 1) + (1, tn)
        acc = jnp.minimum(acc, s)

    o_ref[...] = acc


def tropical_min_relu(x, w, *, tm=None, tn=128, tk=128):
    """out[b, o] = min_k( mask(x)[b, k] + w[o, k] );  mask sets x<0 entries to +inf.

    x: (batch, in_features) f32        w: (out_features, in_features) f32
    """
    B, K = x.shape
    O, Kw = w.shape
    assert K == Kw, "in_features mismatch"

    out_dtype = x.dtype
    x = x.astype(jnp.float32)
    w = w.astype(jnp.float32)
    # TODO(synk): optional bf16 input/weight path for v6e/v7x (halves HBM
    # traffic for this MXU-free kernel); keep f32 on v5e (no bf16 VPU).

    # Tile selection: lane-dense output (tn % 128 == 0), (8,128)-aligned
    # blocks; tm kept modest so the running-min accumulator + masked X tile
    # stay comfortably inside the 64-vreg file.
    if tm is None:
        tm = min(64, _round_up(B, 8))
    assert tm % 8 == 0 and tn % 128 == 0 and tk % 128 == 0

    Bp, Op, Kp = _round_up(B, tm), _round_up(O, tn), _round_up(K, tk)

    # Padding: extra K columns of X are +inf (identity of `min`, never
    # contribute); padded rows/cols of W^T are 0 (their outputs are sliced
    # off).  No -inf anywhere, so there is no inf + (-inf) = NaN hazard.
    xp = jnp.full((Bp, Kp), jnp.inf, jnp.float32).at[:B, :K].set(x)
    # W passed pre-transposed (K, O): its tile is (tk, tn) with out_features
    # on lanes -> unmasked, lane-dense stores on the output side.
    wtp = jnp.zeros((Kp, Op), jnp.float32).at[:K, :O].set(w.T)

    grid = (Bp // tm, Op // tn, Kp // tk)   # (i, j) parallel, k = reduction

    out = pl.pallas_call(
        tropical_minrelu_kernel,
        out_shape=jax.ShapeDtypeStruct((Bp, Op), jnp.float32),
        grid_spec=pltpu.PrefetchScalarGridSpec(
            num_scalar_prefetch=0,
            grid=grid,
            in_specs=[
                pl.BlockSpec((tm, tk), lambda i, j, k: (i, k)),   # X tile
                pl.BlockSpec((tk, tn), lambda i, j, k: (k, j)),   # W^T tile
            ],
            out_specs=pl.BlockSpec((tm, tn), lambda i, j, k: (i, j)),
        ),
        compiler_params=pltpu.CompilerParams(
            # (i, j) can shard across TensorCores on megacore / v7x; k is the
            # running-min reduction and must stay sequential.
            dimension_semantics=("parallel", "parallel", "arbitrary"),
            # Explicit VMEM budget with headroom (v7x has only 64 MiB VMEM).
            vmem_limit_bytes=32 * 1024 * 1024,
        ),
    )(xp, wtp)

    return out[:B, :O].astype(out_dtype)


def xavier_uniform(key, out_features, in_features, dtype=jnp.float32):
    # torch.nn.init.xavier_uniform_: U(-a, a), a = sqrt(6 / (fan_in + fan_out))
    bound = (6.0 / (in_features + out_features)) ** 0.5
    return jax.random.uniform(
        key, (out_features, in_features), dtype=dtype, minval=-bound, maxval=bound
    )


if __name__ == "__main__":
    batch, in_features, out_features = 8, 32, 16

    key = jax.random.PRNGKey(0)
    kx, kw = jax.random.split(key)
    x = jax.random.normal(kx, (batch, in_features), dtype=jnp.float32)
    W = xavier_uniform(kw, out_features, in_features)

    out = tropical_min_relu(x, W)
    out = jax.block_until_ready(out)

    # Pure-JAX reference for sanity.
    x_masked = jnp.where(x < 0, jnp.inf, x)
    ref = jnp.min(x_masked[:, None, :] + W[None, :, :], axis=-1)
    assert out.shape == (batch, out_features)
    assert bool(jnp.allclose(out, ref, rtol=1e-6, atol=1e-6)), "mismatch vs reference"

    print("KERNEL_OK")
</pallas_src>

<mosaic_0001>
module attributes {stable_mosaic.version = 11 : i64} {
  func.func @tropical_minrelu_kernel(%arg0: i32, %arg1: i32, %arg2: i32, %arg3: memref<8x128xf32, #tpu.memory_space<vmem>>, %arg4: memref<128x128xf32, #tpu.memory_space<vmem>>, %arg5: memref<8x128xf32, #tpu.memory_space<vmem>>) attributes {dimension_semantics = [#tpu.dimension_semantics<parallel>, #tpu.dimension_semantics<parallel>, #tpu.dimension_semantics<arbitrary>], iteration_bounds = array<i64: 1, 1, 1>, scalar_prefetch = 0 : i64, scratch_operands = 0 : i64, tpu.core_type = #tpu.core_type<tc>, window_params = [{transform_indices = @transform_0, window_bounds = array<i64: 8, 128>}, {transform_indices = @transform_1, window_bounds = array<i64: 128, 128>}, {transform_indices = @transform_2, window_bounds = array<i64: 8, 128>}]} {
    %c0_i32 = arith.constant 0 : i32
    %0 = arith.cmpi eq, %arg2, %c0_i32 : i32
    %1 = arith.extui %0 : i1 to i32
    %c0_i32_0 = arith.constant 0 : i32
    %2 = arith.cmpi ne, %1, %c0_i32_0 : i32
    scf.if %2 {
      %cst_136 = arith.constant 0x7F800000 : f32
      %778 = vector.broadcast %cst_136 : f32 to vector<8x128xf32>
      %c0_137 = arith.constant 0 : index
      %c0_138 = arith.constant 0 : index
      %779 = vector.load %arg5[%c0_137, %c0_138] : memref<8x128xf32, #tpu.memory_space<vmem>>, vector<8x128xf32>
      tpu.vector_store %arg5[%c0_137, %c0_138], %778 {strides = array<i32>} : memref<8x128xf32, #tpu.memory_space<vmem>>, vector<8x128xf32>,
    } else {
    }
    %c0 = arith.constant 0 : index
    %c0_1 = arith.constant 0 : index
    %3 = vector.load %arg3[%c0, %c0_1] : memref<8x128xf32, #tpu.memory_space<vmem>>, vector<8x128xf32>
    %cst = arith.constant 0.000000e+00 : f32
    %4 = vector.broadcast %cst : f32 to vector<8x128xf32>
    %5 = arith.cmpf olt, %3, %4 : vector<8x128xf32>
    %cst_2 = arith.constant 0x7F800000 : f32
    %6 = vector.broadcast %cst_2 : f32 to vector<8x128xf32>
    %7 = arith.select %5, %6, %3 : vector<8x128xi1>, vector<8x128xf32>
    %c0_3 = arith.constant 0 : index
    %c0_4 = arith.constant 0 : index
    %8 = vector.load %arg5[%c0_3, %c0_4] : memref<8x128xf32, #tpu.memory_space<vmem>>, vector<8x128xf32>
    %9 = vector.extract_strided_slice %7 {offsets = [0, 0], sizes = [8, 1], strides = [1, 1]} : vector<8x128xf32> to vector<8x1xf32>
    %c0_5 = arith.constant 0 : index
    %c0_6 = arith.constant 0 : index
    %10 = vector.load %arg4[%c0_5, %c0_6] : memref<128x128xf32, #tpu.memory_space<vmem>>, vector<1x128xf32>
    %11 = vector.broadcast %9 : vector<8x1xf32> to vector<8x128xf32>
    %12 = vector.broadcast %10 : vector<1x128xf32> to vector<8x128xf32>
    %13 = arith.addf %11, %12 : vector<8x128xf32>
    %14 = arith.minimumf %8, %13 : vector<8x128xf32>
    %15 = vector.extract_strided_slice %7 {offsets = [0, 1], sizes = [8, 1], strides = [1, 1]} : vector<8x128xf32> to vector<8x1xf32>
    %c1 = arith.constant 1 : index
    %c0_7 = arith.constant 0 : index
    %16 = vector.load %arg4[%c1, %c0_7] : memref<128x128xf32, #tpu.memory_space<vmem>>, vector<1x128xf32>
    %17 = vector.broadcast %15 : vector<8x1xf32> to vector<8x128xf32>
    %18 = vector.broadcast %16 : vector<1x128xf32> to vector<8x128xf32>
    %19 = arith.addf %17, %18 : vector<8x128xf32>
    %20 = arith.minimumf %14, %19 : vector<8x128xf32>
    %21 = vector.extract_strided_slice %7 {offsets = [0, 2], sizes = [8, 1], strides = [1, 1]} : vector<8x128xf32> to vector<8x1xf32>
    %c2 = arith.constant 2 : index
    %c0_8 = arith.constant 0 : index
    %22 = vector.load %arg4[%c2, %c0_8] : memref<128x128xf32, #tpu.memory_space<vmem>>, vector<1x128xf32>
    %23 = vector.broadcast %21 : vector<8x1xf32> to vector<8x128xf32>
    %24 = vector.broadcast %22 : vector<1x128xf32> to vector<8x128xf32>
    %25 = arith.addf %23, %24 : vector<8x128xf32>
    %26 = arith.minimumf %20, %25 : vector<8x128xf32>
    %27 = vector.extract_strided_slice %7 {offsets = [0, 3], sizes = [8, 1], strides = [1, 1]} : vector<8x128xf32> to vector<8x1xf32>
    %c3 = arith.constant 3 : index
    %c0_9 = arith.constant 0 : index
    %28 = vector.load %arg4[%c3, %c0_9] : memref<128x128xf32, #tpu.memory_space<vmem>>, vector<1x128xf32>
    %29 = vector.broadcast %27 : vector<8x1xf32> to vector<8x128xf32>
    %30 = vector.broadcast %28 : vector<1x128xf32> to vector<8x128xf32>
    %31 = arith.addf %29, %30 : vector<8x128xf32>
    %32 = arith.minimumf %26, %31 : vector<8x128xf32>
    %33 = vector.extract_strided_slice %7 {offsets = [0, 4], sizes = [8, 1], strides = [1, 1]} : vector<8x128xf32> to vector<8x1xf32>
    %c4 = arith.constant 4 : index
    %c0_10 = arith.constant 0 : index
    %34 = vector.load %arg4[%c4, %c0_10] : memref<128x128xf32, #tpu.memory_space<vmem>>, vector<1x128xf32>
    %35 = vector.broadcast %33 : vector<8x1xf32> to vector<8x128xf32>
    %36 = vector.broadcast %34 : vector<1x128xf32> to vector<8x128xf32>
    %37 = arith.addf %35, %36 : vector<8x128xf32>
    %38 = arith.minimumf %32, %37 : vector<8x128xf32>
    %39 = vector.extract_strided_slice %7 {offsets = [0, 5], sizes = [8, 1], strides = [1, 1]} : vector<8x128xf32> to vector<8x1xf32>
    %c5 = arith.constant 5 : index
    %c0_11 = arith.constant 0 : index
    %40 = vector.load %arg4[%c5, %c0_11] : memref<128x128xf32, #tpu.memory_space<vmem>>, vector<1x128xf32>
    %41 = vector.broadcast %39 : vector<8x1xf32> to vector<8x128xf32>
    %42 = vector.broadcast %40 : vector<1x128xf32> to vector<8x128xf32>
    %43 = arith.addf %41, %42 : vector<8x128xf32>
    %44 = arith.minimumf %38, %43 : vector<8x128xf32>
    %45 = vector.extract_strided_slice %7 {offsets = [0, 6], sizes = [8, 1], strides = [1, 1]} : vector<8x128xf32> to vector<8x1xf32>
    %c6 = arith.constant 6 : index
    %c0_12 = arith.constant 0 : index
    %46 = vector.load %arg4[%c6, %c0_12] : memref<128x128xf32, #tpu.memory_space<vmem>>, vector<1x128xf32>
    %47 = vector.broadcast %45 : vector<8x1xf32> to vector<8x128xf32>
    %48 = vector.broadcast %46 : vector<1x128xf32> to vector<8x128xf32>
    %49 = arith.addf %47, %48 : vector<8x128xf32>
    %50 = arith.minimumf %44, %49 : vector<8x128xf32>
    %51 = vector.extract_strided_slice %7 {offsets = [0, 7], sizes = [8, 1], strides = [1, 1]} : vector<8x128xf32> to vector<8x1xf32>
    %c7 = arith.constant 7 : index
    %c0_13 = arith.constant 0 : index
    %52 = vector.load %arg4[%c7, %c0_13] : memref<128x128xf32, #tpu.memory_space<vmem>>, vector<1x128xf32>
    %53 = vector.broadcast %51 : vector<8x1xf32> to vector<8x128xf32>
    %54 = vector.broadcast %52 : vector<1x128xf32> to vector<8x128xf32>
    %55 = arith.addf %53, %54 : vector<8x128xf32>
    %56 = arith.minimumf %50, %55 : vector<8x128xf32>
    %57 = vector.extract_strided_slice %7 {offsets = [0, 8], sizes = [8, 1], strides = [1, 1]} : vector<8x128xf32> to vector<8x1xf32>
    %c8 = arith.constant 8 : index
    %c0_14 = arith.constant 0 : index
    %58 = vector.load %arg4[%c8, %c0_14] : memref<128x128xf32, #tpu.memory_space<vmem>>, vector<1x128xf32>
    %59 = vector.broadcast %57 : vector<8x1xf32> to vector<8x128xf32>
    %60 = vector.broadcast %58 : vector<1x128xf32> to vector<8x128xf32>
    %61 = arith.addf %59, %60 : vector<8x128xf32>
    %62 = arith.minimumf %56, %61 : vector<8x128xf32>
    %63 = vector.extract_strided_slice %7 {offsets = [0, 9], sizes = [8, 1], strides = [1, 1]} : vector<8x128xf32> to vector<8x1xf32>
    %c9 = arith.constant 9 : index
    %c0_15 = arith.constant 0 : index
    %64 = vector.load %arg4[%c9, %c0_15] : memref<128x128xf32, #tpu.memory_space<vmem>>, vector<1x128xf32>
    %65 = vector.broadcast %63 : vector<8x1xf32> to vector<8x128xf32>
    %66 = vector.broadcast %64 : vector<1x128xf32> to vector<8x128xf32>
    %67 = arith.addf %65, %66 : vector<8x128xf32>
    %68 = arith.minimumf %62, %67 : vector<8x128xf32>
    %69 = vector.extract_strided_slice %7 {offsets = [0, 10], sizes = [8, 1], strides = [1, 1]} : vector<8x128xf32> to vector<8x1xf32>
    %c10 = arith.constant 10 : index
    %c0_16 = arith.constant 0 : index
    %70 = vector.load %arg4[%c10, %c0_16] : memref<128x128xf32, #tpu.memory_space<vmem>>, vector<1x128xf32>
    %71 = vector.broadcast %69 : vector<8x1xf32> to vector<8x128xf32>
    %72 = vector.broadcast %70 : vector<1x128xf32> to vector<8x128xf32>
    %73 = arith.addf %71, %72 : vector<8x128xf32>
    %74 = arith.minimumf %68, %73 : vector<8x128xf32>
    %75 = vector.extract_strided_slice %7 {offsets = [0, 11], sizes = [8, 1], strides = [1, 1]} : vector<8x128xf32> to vector<8x1xf32>
    %c11 = arith.constant 11 : index
    %c0_17 = arith.constant 0 : index
    %76 = vector.load %arg4[%c11, %c0_17] : memref<128x128xf32, #tpu.memory_space<vmem>>, vector<1x128xf32>
    %77 = vector.broadcast %75 : vector<8x1xf32> to vector<8x128xf32>
    %78 = vector.broadcast %76 : vector<1x128xf32> to vector<8x128xf32>
    %79 = arith.addf %77, %78 : vector<8x128xf32>
    %80 = arith.minimumf %74, %79 : vector<8x128xf32>
    %81 = vector.extract_strided_slice %7 {offsets = [0, 12], sizes = [8, 1], strides = [1, 1]} : vector<8x128xf32> to vector<8x1xf32>
    %c12 = arith.constant 12 : index
    %c0_18 = arith.constant 0 : index
    %82 = vector.load %arg4[%c12, %c0_18] : memref<128x128xf32, #tpu.memory_space<vmem>>, vector<1x128xf32>
    %83 = vector.broadcast %81 : vector<8x1xf32> to vector<8x128xf32>
    %84 = vector.broadcast %82 : vector<1x128xf32> to vector<8x128xf32>
    %85 = arith.addf %83, %84 : vector<8x128xf32>
    %86 = arith.minimumf %80, %85 : vector<8x128xf32>
    %87 = vector.extract_strided_slice %7 {offsets = [0, 13], sizes = [8, 1], strides = [1, 1]} : vector<8x128xf32> to vector<8x1xf32>
    %c13 = arith.constant 13 : index
    %c0_19 = arith.constant 0 : index
    %88 = vector.load %arg4[%c13, %c0_19] : memref<128x128xf32, #tpu.memory_space<vmem>>, vector<1x128xf32>
    %89 = vector.broadcast %87 : vector<8x1xf32> to vector<8x128xf32>
    %90 = vector.broadcast %88 : vector<1x128xf32> to vector<8x128xf32>
    %91 = arith.addf %89, %90 : vector<8x128xf32>
    %92 = arith.minimumf %86, %91 : vector<8x128xf32>
    %93 = vector.extract_strided_slice %7 {offsets = [0, 14], sizes = [8, 1], strides = [1, 1]} : vector<8x128xf32> to vector<8x1xf32>
    %c14 = arith.constant 14 : index
    %c0_20 = arith.constant 0 : index
    %94 = vector.load %arg4[%c14, %c0_20] : memref<128x128xf32, #tpu.memory_space<vmem>>, vector<1x128xf32>
    %95 = vector.broadcast %93 : vector<8x1xf32> to vector<8x128xf32>
    %96 = vector.broadcast %94 : vector<1x128xf32> to vector<8x128xf32>
    %97 = arith.addf %95, %96 : vector<8x128xf32>
    %98 = arith.minimumf %92, %97 : vector<8x128xf32>
    %99 = vector.extract_strided_slice %7 {offsets = [0, 15], sizes = [8, 1], strides = [1, 1]} : vector<8x128xf32> to vector<8x1xf32>
    %c15 = arith.constant 15 : index
    %c0_21 = arith.constant 0 : index
    %100 = vector.load %arg4[%c15, %c0_21] : memref<128x128xf32, #tpu.memory_space<vmem>>, vector<1x128xf32>
    %101 = vector.broadcast %99 : vector<8x1xf32> to vector<8x128xf32>
    %102 = vector.broadcast %100 : vector<1x128xf32> to vector<8x128xf32>
    %103 = arith.addf %101, %102 : vector<8x128xf32>
    %104 = arith.minimumf %98, %103 : vector<8x128xf32>
    %105 = vector.extract_strided_slice %7 {offsets = [0, 16], sizes = [8, 1], strides = [1, 1]} : vector<8x128xf32> to vector<8x1xf32>
    %c16 = arith.constant 16 : index
    %c0_22 = arith.constant 0 : index
    %106 = vector.load %arg4[%c16, %c0_22] : memref<128x128xf32, #tpu.memory_space<vmem>>, vector<1x128xf32>
    %107 = vector.broadcast %105 : vector<8x1xf32> to vector<8x128xf32>
    %108 = vector.broadcast %106 : vector<1x128xf32> to vector<8x128xf32>
    %109 = arith.addf %107, %108 : vector<8x128xf32>
    %110 = arith.minimumf %104, %109 : vector<8x128xf32>
    %111 = vector.extract_strided_slice %7 {offsets = [0, 17], sizes = [8, 1], strides = [1, 1]} : vector<8x128xf32> to vector<8x1xf32>
    %c17 = arith.constant 17 : index
    %c0_23 = arith.constant 0 : index
    %112 = vector.load %arg4[%c17, %c0_23] : memref<128x128xf32, #tpu.memory_space<vmem>>, vector<1x128xf32>
    %113 = vector.broadcast %111 : vector<8x1xf32> to vector<8x128xf32>
    %114 = vector.broadcast %112 : vector<1x128xf32> to vector<8x128xf32>
    %115 = arith.addf %113, %114 : vector<8x128xf32>
    %116 = arith.minimumf %110, %115 : vector<8x128xf32>
    %117 = vector.extract_strided_slice %7 {offsets = [0, 18], sizes = [8, 1], strides = [1, 1]} : vector<8x128xf32> to vector<8x1xf32>
    %c18 = arith.constant 18 : index
    %c0_24 = arith.constant 0 : index
    %118 = vector.load %arg4[%c18, %c0_24] : memref<128x128xf32, #tpu.memory_space<vmem>>, vector<1x128xf32>
    %119 = vector.broadcast %117 : vector<8x1xf32> to vector<8x128xf32>
    %120 = vector.broadcast %118 : vector<1x128xf32> to vector<8x128xf32>
    %121 = arith.addf %119, %120 : vector<8x128xf32>
    %122 = arith.minimumf %116, %121 : vector<8x128xf32>
    %123 = vector.extract_strided_slice %7 {offsets = [0, 19], sizes = [8, 1], strides = [1, 1]} : vector<8x128xf32> to vector<8x1xf32>
    %c19 = arith.constant 19 : index
    %c0_25 = arith.constant 0 : index
    %124 = vector.load %arg4[%c19, %c0_25] : memref<128x128xf32, #tpu.memory_space<vmem>>, vector<1x128xf32>
    %125 = vector.broadcast %123 : vector<8x1xf32> to vector<8x128xf32>
    %126 = vector.broadcast %124 : vector<1x128xf32> to vector<8x128xf32>
    %127 = arith.addf %125, %126 : vector<8x128xf32>
    %128 = arith.minimumf %122, %127 : vector<8x128xf32>
    %129 = vector.extract_strided_slice %7 {offsets = [0, 20], sizes = [8, 1], strides = [1, 1]} : vector<8x128xf32> to vector<8x1xf32>
    %c20 = arith.constant 20 : index
    %c0_26 = arith.constant 0 : index
    %130 = vector.load %arg4[%c20, %c0_26] : memref<128x128xf32, #tpu.memory_space<vmem>>, vector<1x128xf32>
    %131 = vector.broadcast %129 : vector<8x1xf32> to vector<8x128xf32>
    %132 = vector.broadcast %130 : vector<1x128xf32> to vector<8x128xf32>
    %133 = arith.addf %131, %132 : vector<8x128xf32>
    %134 = arith.minimumf %128, %133 : vector<8x128xf32>
    %135 = vector.extract_strided_slice %7 {offsets = [0, 21], sizes = [8, 1], strides = [1, 1]} : vector<8x128xf32> to vector<8x1xf32>
    %c21 = arith.constant 21 : index
    %c0_27 = arith.constant 0 : index
    %136 = vector.load %arg4[%c21, %c0_27] : memref<128x128xf32, #tpu.memory_space<vmem>>, vector<1x128xf32>
    %137 = vector.broadcast %135 : vector<8x1xf32> to vector<8x128xf32>
    %138 = vector.broadcast %136 : vector<1x128xf32> to vector<8x128xf32>
    %139 = arith.addf %137, %138 : vector<8x128xf32>
    %140 = arith.minimumf %134, %139 : vector<8x128xf32>
    %141 = vector.extract_strided_slice %7 {offsets = [0, 22], sizes = [8, 1], strides = [1, 1]} : vector<8x128xf32> to vector<8x1xf32>
    %c22 = arith.constant 22 : index
    %c0_28 = arith.constant 0 : index
    %142 = vector.load %arg4[%c22, %c0_28] : memref<128x128xf32, #tpu.memory_space<vmem>>, vector<1x128xf32>
    %143 = vector.broadcast %141 : vector<8x1xf32> to vector<8x128xf32>
    %144 = vector.broadcast %142 : vector<1x128xf32> to vector<8x128xf32>
    %145 = arith.addf %143, %144 : vector<8x128xf32>
    %146 = arith.minimumf %140, %145 : vector<8x128xf32>
    %147 = vector.extract_strided_slice %7 {offsets = [0, 23], sizes = [8, 1], strides = [1, 1]} : vector<8x128xf32> to vector<8x1xf32>
    %c23 = arith.constant 23 : index
    %c0_29 = arith.constant 0 : index
    %148 = vector.load %arg4[%c23, %c0_29] : memref<128x128xf32, #tpu.memory_space<vmem>>, vector<1x128xf32>
    %149 = vector.broadcast %147 : vector<8x1xf32> to vector<8x128xf32>
    %150 = vector.broadcast %148 : vector<1x128xf32> to vector<8x128xf32>
    %151 = arith.addf %149, %150 : vector<8x128xf32>
    %152 = arith.minimumf %146, %151 : vector<8x128xf32>
    %153 = vector.extract_strided_slice %7 {offsets = [0, 24], sizes = [8, 1], strides = [1, 1]} : vector<8x128xf32> to vector<8x1xf32>
    %c24 = arith.constant 24 : index
    %c0_30 = arith.constant 0 : index
    %154 = vector.load %arg4[%c24, %c0_30] : memref<128x128xf32, #tpu.memory_space<vmem>>, vector<1x128xf32>
    %155 = vector.broadcast %153 : vector<8x1xf32> to vector<8x128xf32>
    %156 = vector.broadcast %154 : vector<1x128xf32> to vector<8x128xf32>
    %157 = arith.addf %155, %156 : vector<8x128xf32>
    %158 = arith.minimumf %152, %157 : vector<8x128xf32>
    %159 = vector.extract_strided_slice %7 {offsets = [0, 25], sizes = [8, 1], strides = [1, 1]} : vector<8x128xf32> to vector<8x1xf32>
    %c25 = arith.constant 25 : index
    %c0_31 = arith.constant 0 : index
    %160 = vector.load %arg4[%c25, %c0_31] : memref<128x128xf32, #tpu.memory_space<vmem>>, vector<1x128xf32>
    %161 = vector.broadcast %159 : vector<8x1xf32> to vector<8x128xf32>
    %162 = vector.broadcast %160 : vector<1x128xf32> to vector<8x128xf32>
    %163 = arith.addf %161, %162 : vector<8x128xf32>
    %164 = arith.minimumf %158, %163 : vector<8x128xf32>
    %165 = vector.extract_strided_slice %7 {offsets = [0, 26], sizes = [8, 1], strides = [1, 1]} : vector<8x128xf32> to vector<8x1xf32>
    %c26 = arith.constant 26 : index
    %c0_32 = arith.constant 0 : index
    %166 = vector.load %arg4[%c26, %c0_32] : memref<128x128xf32, #tpu.memory_space<vmem>>, vector<1x128xf32>
    %167 = vector.broadcast %165 : vector<8x1xf32> to vector<8x128xf32>
    %168 = vector.broadcast %166 : vector<1x128xf32> to vector<8x128xf32>
    %169 = arith.addf %167, %168 : vector<8x128xf32>
    %170 = arith.minimumf %164, %169 : vector<8x128xf32>
    %171 = vector.extract_strided_slice %7 {offsets = [0, 27], sizes = [8, 1], strides = [1, 1]} : vector<8x128xf32> to vector<8x1xf32>
    %c27 = arith.constant 27 : index
    %c0_33 = arith.constant 0 : index
    %172 = vector.load %arg4[%c27, %c0_33] : memref<128x128xf32, #tpu.memory_space<vmem>>, vector<1x128xf32>
    %173 = vector.broadcast %171 : vector<8x1xf32> to vector<8x128xf32>
    %174 = vector.broadcast %172 : vector<1x128xf32> to vector<8x128xf32>
    %175 = arith.addf %173, %174 : vector<8x128xf32>
    %176 = arith.minimumf %170, %175 : vector<8x128xf32>
    %177 = vector.extract_strided_slice %7 {offsets = [0, 28], sizes = [8, 1], strides = [1, 1]} : vector<8x128xf32> to vector<8x1xf32>
    %c28 = arith.constant 28 : index
    %c0_34 = arith.constant 0 : index
    %178 = vector.load %arg4[%c28, %c0_34] : memref<128x128xf32, #tpu.memory_space<vmem>>, vector<1x128xf32>
    %179 = vector.broadcast %177 : vector<8x1xf32> to vector<8x128xf32>
    %180 = vector.broadcast %178 : vector<1x128xf32> to vector<8x128xf32>
    %181 = arith.addf %179, %180 : vector<8x128xf32>
    %182 = arith.minimumf %176, %181 : vector<8x128xf32>
    %183 = vector.extract_strided_slice %7 {offsets = [0, 29], sizes = [8, 1], strides = [1, 1]} : vector<8x128xf32> to vector<8x1xf32>
    %c29 = arith.constant 29 : index
    %c0_35 = arith.constant 0 : index
    %184 = vector.load %arg4[%c29, %c0_35] : memref<128x128xf32, #tpu.memory_space<vmem>>, vector<1x128xf32>
    %185 = vector.broadcast %183 : vector<8x1xf32> to vector<8x128xf32>
    %186 = vector.broadcast %184 : vector<1x128xf32> to vector<8x128xf32>
    %187 = arith.addf %185, %186 : vector<8x128xf32>
    %188 = arith.minimumf %182, %187 : vector<8x128xf32>
    %189 = vector.extract_strided_slice %7 {offsets = [0, 30], sizes = [8, 1], strides = [1, 1]} : vector<8x128xf32> to vector<8x1xf32>
    %c30 = arith.constant 30 : index
    %c0_36 = arith.constant 0 : index
    %190 = vector.load %arg4[%c30, %c0_36] : memref<128x128xf32, #tpu.memory_space<vmem>>, vector<1x128xf32>
    %191 = vector.broadcast %189 : vector<8x1xf32> to vector<8x128xf32>
    %192 = vector.broadcast %190 : vector<1x128xf32> to vector<8x128xf32>
    %193 = arith.addf %191, %192 : vector<8x128xf32>
    %194 = arith.minimumf %188, %193 : vector<8x128xf32>
    %195 = vector.extract_strided_slice %7 {offsets = [0, 31], sizes = [8, 1], strides = [1, 1]} : vector<8x128xf32> to vector<8x1xf32>
    %c31 = arith.constant 31 : index
    %c0_37 = arith.constant 0 : index
    %196 = vector.load %arg4[%c31, %c0_37] : memref<128x128xf32, #tpu.memory_space<vmem>>, vector<1x128xf32>
    %197 = vector.broadcast %195 : vector<8x1xf32> to vector<8x128xf32>
    %198 = vector.broadcast %196 : vector<1x128xf32> to vector<8x128xf32>
    %199 = arith.addf %197, %198 : vector<8x128xf32>
    %200 = arith.minimumf %194, %199 : vector<8x128xf32>
    %201 = vector.extract_strided_slice %7 {offsets = [0, 32], sizes = [8, 1], strides = [1, 1]} : vector<8x128xf32> to vector<8x1xf32>
    %c32 = arith.constant 32 : index
    %c0_38 = arith.constant 0 : index
    %202 = vector.load %arg4[%c32, %c0_38] : memref<128x128xf32, #tpu.memory_space<vmem>>, vector<1x128xf32>
    %203 = vector.broadcast %201 : vector<8x1xf32> to vector<8x128xf32>
    %204 = vector.broadcast %202 : vector<1x128xf32> to vector<8x128xf32>
    %205 = arith.addf %203, %204 : vector<8x128xf32>
    %206 = arith.minimumf %200, %205 : vector<8x128xf32>
    %207 = vector.extract_strided_slice %7 {offsets = [0, 33], sizes = [8, 1], strides = [1, 1]} : vector<8x128xf32> to vector<8x1xf32>
    %c33 = arith.constant 33 : index
    %c0_39 = arith.constant 0 : index
    %208 = vector.load %arg4[%c33, %c0_39] : memref<128x128xf32, #tpu.memory_space<vmem>>, vector<1x128xf32>
    %209 = vector.broadcast %207 : vector<8x1xf32> to vector<8x128xf32>
    %210 = vector.broadcast %208 : vector<1x128xf32> to vector<8x128xf32>
    %211 = arith.addf %209, %210 : vector<8x128xf32>
    %212 = arith.minimumf %206, %211 : vector<8x128xf32>
    %213 = vector.extract_strided_slice %7 {offsets = [0, 34], sizes = [8, 1], strides = [1, 1]} : vector<8x128xf32> to vector<8x1xf32>
    %c34 = arith.constant 34 : index
    %c0_40 = arith.constant 0 : index
    %214 = vector.load %arg4[%c34, %c0_40] : memref<128x128xf32, #tpu.memory_space<vmem>>, vector<1x128xf32>
    %215 = vector.broadcast %213 : vector<8x1xf32> to vector<8x128xf32>
    %216 = vector.broadcast %214 : vector<1x128xf32> to vector<8x128xf32>
    %217 = arith.addf %215, %216 : vector<8x128xf32>
    %218 = arith.minimumf %212, %217 : vector<8x128xf32>
    %219 = vector.extract_strided_slice %7 {offsets = [0, 35], sizes = [8, 1], strides = [1, 1]} : vector<8x128xf32> to vector<8x1xf32>
    %c35 = arith.constant 35 : index
    %c0_41 = arith.constant 0 : index
    %220 = vector.load %arg4[%c35, %c0_41] : memref<128x128xf32, #tpu.memory_space<vmem>>, vector<1x128xf32>
    %221 = vector.broadcast %219 : vector<8x1xf32> to vector<8x128xf32>
    %222 = vector.broadcast %220 : vector<1x128xf32> to vector<8x128xf32>
    %223 = arith.addf %221, %222 : vector<8x128xf32>
    %224 = arith.minimumf %218, %223 : vector<8x128xf32>
    %225 = vector.extract_strided_slice %7 {offsets = [0, 36], sizes = [8, 1], strides = [1, 1]} : vector<8x128xf32> to vector<8x1xf32>
    %c36 = arith.constant 36 : index
    %c0_42 = arith.constant 0 : index
    %226 = vector.load %arg4[%c36, %c0_42] : memref<128x128xf32, #tpu.memory_space<vmem>>, vector<1x128xf32>
    %227 = vector.broadcast %225 : vector<8x1xf32> to vector<8x128xf32>
    %228 = vector.broadcast %226 : vector<1x128xf32> to vector<8x128xf32>
    %229 = arith.addf %227, %228 : vector<8x128xf32>
    %230 = arith.minimumf %224, %229 : vector<8x128xf32>
    %231 = vector.extract_strided_slice %7 {offsets = [0, 37], sizes = [8, 1], strides = [1, 1]} : vector<8x128xf32> to vector<8x1xf32>
    %c37 = arith.constant 37 : index
    %c0_43 = arith.constant 0 : index
    %232 = vector.load %arg4[%c37, %c0_43] : memref<128x128xf32, #tpu.memory_space<vmem>>, vector<1x128xf32>
    %233 = vector.broadcast %231 : vector<8x1xf32> to vector<8x128xf32>
    %234 = vector.broadcast %232 : vector<1x128xf32> to vector<8x128xf32>
    %235 = arith.addf %233, %234 : vector<8x128xf32>
    %236 = arith.minimumf %230, %235 : vector<8x128xf32>
    %237 = vector.extract_strided_slice %7 {offsets = [0, 38], sizes = [8, 1], strides = [1, 1]} : vector<8x128xf32> to vector<8x1xf32>
    %c38 = arith.constant 38 : index
    %c0_44 = arith.constant 0 : index
    %238 = vector.load %arg4[%c38, %c0_44] : memref<128x128xf32, #tpu.memory_space<vmem>>, vector<1x128xf32>
    %239 = vector.broadcast %237 : vector<8x1xf32> to vector<8x128xf32>
    %240 = vector.broadcast %238 : vector<1x128xf32> to vector<8x128xf32>
    %241 = arith.addf %239, %240 : vector<8x128xf32>
    %242 = arith.minimumf %236, %241 : vector<8x128xf32>
    %243 = vector.extract_strided_slice %7 {offsets = [0, 39], sizes = [8, 1], strides = [1, 1]} : vector<8x128xf32> to vector<8x1xf32>
    %c39 = arith.constant 39 : index
    %c0_45 = arith.constant 0 : index
    %244 = vector.load %arg4[%c39, %c0_45] : memref<128x128xf32, #tpu.memory_space<vmem>>, vector<1x128xf32>
    %245 = vector.broadcast %243 : vector<8x1xf32> to vector<8x128xf32>
    %246 = vector.broadcast %244 : vector<1x128xf32> to vector<8x128xf32>
    %247 = arith.addf %245, %246 : vector<8x128xf32>
    %248 = arith.minimumf %242, %247 : vector<8x128xf32>
    %249 = vector.extract_strided_slice %7 {offsets = [0, 40], sizes = [8, 1], strides = [1, 1]} : vector<8x128xf32> to vector<8x1xf32>
    %c40 = arith.constant 40 : index
    %c0_46 = arith.constant 0 : index
    %250 = vector.load %arg4[%c40, %c0_46] : memref<128x128xf32, #tpu.memory_space<vmem>>, vector<1x128xf32>
    %251 = vector.broadcast %249 : vector<8x1xf32> to vector<8x128xf32>
    %252 = vector.broadcast %250 : vector<1x128xf32> to vector<8x128xf32>
    %253 = arith.addf %251, %252 : vector<8x128xf32>
    %254 = arith.minimumf %248, %253 : vector<8x128xf32>
    %255 = vector.extract_strided_slice %7 {offsets = [0, 41], sizes = [8, 1], strides = [1, 1]} : vector<8x128xf32> to vector<8x1xf32>
    %c41 = arith.constant 41 : index
    %c0_47 = arith.constant 0 : index
    %256 = vector.load %arg4[%c41, %c0_47] : memref<128x128xf32, #tpu.memory_space<vmem>>, vector<1x128xf32>
    %257 = vector.broadcast %255 : vector<8x1xf32> to vector<8x128xf32>
    %258 = vector.broadcast %256 : vector<1x128xf32> to vector<8x128xf32>
    %259 = arith.addf %257, %258 : vector<8x128xf32>
    %260 = arith.minimumf %254, %259 : vector<8x128xf32>
    %261 = vector.extract_strided_slice %7 {offsets = [0, 42], sizes = [8, 1], strides = [1, 1]} : vector<8x128xf32> to vector<8x1xf32>
    %c42 = arith.constant 42 : index
    %c0_48 = arith.constant 0 : index
    %262 = vector.load %arg4[%c42, %c0_48] : memref<128x128xf32, #tpu.memory_space<vmem>>, vector<1x128xf32>
    %263 = vector.broadcast %261 : vector<8x1xf32> to vector<8x128xf32>
    %264 = vector.broadcast %262 : vector<1x128xf32> to vector<8x128xf32>
    %265 = arith.addf %263, %264 : vector<8x128xf32>
    %266 = arith.minimumf %260, %265 : vector<8x128xf32>
    %267 = vector.extract_strided_slice %7 {offsets = [0, 43], sizes = [8, 1], strides = [1, 1]} : vector<8x128xf32> to vector<8x1xf32>
    %c43 = arith.constant 43 : index
    %c0_49 = arith.constant 0 : index
    %268 = vector.load %arg4[%c43, %c0_49] : memref<128x128xf32, #tpu.memory_space<vmem>>, vector<1x128xf32>
    %269 = vector.broadcast %267 : vector<8x1xf32> to vector<8x128xf32>
    %270 = vector.broadcast %268 : vector<1x128xf32> to vector<8x128xf32>
    %271 = arith.addf %269, %270 : vector<8x128xf32>
    %272 = arith.minimumf %266, %271 : vector<8x128xf32>
    %273 = vector.extract_strided_slice %7 {offsets = [0, 44], sizes = [8, 1], strides = [1, 1]} : vector<8x128xf32> to vector<8x1xf32>
    %c44 = arith.constant 44 : index
    %c0_50 = arith.constant 0 : index
    %274 = vector.load %arg4[%c44, %c0_50] : memref<128x128xf32, #tpu.memory_space<vmem>>, vector<1x128xf32>
    %275 = vector.broadcast %273 : vector<8x1xf32> to vector<8x128xf32>
    %276 = vector.broadcast %274 : vector<1x128xf32> to vector<8x128xf32>
    %277 = arith.addf %275, %276 : vector<8x128xf32>
    %278 = arith.minimumf %272, %277 : vector<8x128xf32>
    %279 = vector.extract_strided_slice %7 {offsets = [0, 45], sizes = [8, 1], strides = [1, 1]} : vector<8x128xf32> to vector<8x1xf32>
    %c45 = arith.constant 45 : index
    %c0_51 = arith.constant 0 : index
    %280 = vector.load %arg4[%c45, %c0_51] : memref<128x128xf32, #tpu.memory_space<vmem>>, vector<1x128xf32>
    %281 = vector.broadcast %279 : vector<8x1xf32> to vector<8x128xf32>
    %282 = vector.broadcast %280 : vector<1x128xf32> to vector<8x128xf32>
    %283 = arith.addf %281, %282 : vector<8x128xf32>
    %284 = arith.minimumf %278, %283 : vector<8x128xf32>
    %285 = vector.extract_strided_slice %7 {offsets = [0, 46], sizes = [8, 1], strides = [1, 1]} : vector<8x128xf32> to vector<8x1xf32>
    %c46 = arith.constant 46 : index
    %c0_52 = arith.constant 0 : index
    %286 = vector.load %arg4[%c46, %c0_52] : memref<128x128xf32, #tpu.memory_space<vmem>>, vector<1x128xf32>
    %287 = vector.broadcast %285 : vector<8x1xf32> to vector<8x128xf32>
    %288 = vector.broadcast %286 : vector<1x128xf32> to vector<8x128xf32>
    %289 = arith.addf %287, %288 : vector<8x128xf32>
    %290 = arith.minimumf %284, %289 : vector<8x128xf32>
    %291 = vector.extract_strided_slice %7 {offsets = [0, 47], sizes = [8, 1], strides = [1, 1]} : vector<8x128xf32> to vector<8x1xf32>
    %c47 = arith.constant 47 : index
    %c0_53 = arith.constant 0 : index
    %292 = vector.load %arg4[%c47, %c0_53] : memref<128x128xf32, #tpu.memory_space<vmem>>, vector<1x128xf32>
    %293 = vector.broadcast %291 : vector<8x1xf32> to vector<8x128xf32>
    %294 = vector.broadcast %292 : vector<1x128xf32> to vector<8x128xf32>
    %295 = arith.addf %293, %294 : vector<8x128xf32>
    %296 = arith.minimumf %290, %295 : vector<8x128xf32>
    %297 = vector.extract_strided_slice %7 {offsets = [0, 48], sizes = [8, 1], strides = [1, 1]} : vector<8x128xf32> to vector<8x1xf32>
    %c48 = arith.constant 48 : index
    %c0_54 = arith.constant 0 : index
    %298 = vector.load %arg4[%c48, %c0_54] : memref<128x128xf32, #tpu.memory_space<vmem>>, vector<1x128xf32>
    %299 = vector.broadcast %297 : vector<8x1xf32> to vector<8x128xf32>
    %300 = vector.broadcast %298 : vector<1x128xf32> to vector<8x128xf32>
    %301 = arith.addf %299, %300 : vector<8x128xf32>
    %302 = arith.minimumf %296, %301 : vector<8x128xf32>
    %303 = vector.extract_strided_slice %7 {offsets = [0, 49], sizes = [8, 1], strides = [1, 1]} : vector<8x128xf32> to vector<8x1xf32>
    %c49 = arith.constant 49 : index
    %c0_55 = arith.constant 0 : index
    %304 = vector.load %arg4[%c49, %c0_55] : memref<128x128xf32, #tpu.memory_space<vmem>>, vector<1x128xf32>
    %305 = vector.broadcast %303 : vector<8x1xf32> to vector<8x128xf32>
    %306 = vector.broadcast %304 : vector<1x128xf32> to vector<8x128xf32>
    %307 = arith.addf %305, %306 : vector<8x128xf32>
    %308 = arith.minimumf %302, %307 : vector<8x128xf32>
    %309 = vector.extract_strided_slice %7 {offsets = [0, 50], sizes = [8, 1], strides = [1, 1]} : vector<8x128xf32> to vector<8x1xf32>
    %c50 = arith.constant 50 : index
    %c0_56 = arith.constant 0 : index
    %310 = vector.load %arg4[%c50, %c0_56] : memref<128x128xf32, #tpu.memory_space<vmem>>, vector<1x128xf32>
    %311 = vector.broadcast %309 : vector<8x1xf32> to vector<8x128xf32>
    %312 = vector.broadcast %310 : vector<1x128xf32> to vector<8x128xf32>
    %313 = arith.addf %311, %312 : vector<8x128xf32>
    %314 = arith.minimumf %308, %313 : vector<8x128xf32>
    %315 = vector.extract_strided_slice %7 {offsets = [0, 51], sizes = [8, 1], strides = [1, 1]} : vector<8x128xf32> to vector<8x1xf32>
    %c51 = arith.constant 51 : index
    %c0_57 = arith.constant 0 : index
    %316 = vector.load %arg4[%c51, %c0_57] : memref<128x128xf32, #tpu.memory_space<vmem>>, vector<1x128xf32>
    %317 = vector.broadcast %315 : vector<8x1xf32> to vector<8x128xf32>
    %318 = vector.broadcast %316 : vector<1x128xf32> to vector<8x128xf32>
    %319 = arith.addf %317, %318 : vector<8x128xf32>
    %320 = arith.minimumf %314, %319 : vector<8x128xf32>
    %321 = vector.extract_strided_slice %7 {offsets = [0, 52], sizes = [8, 1], strides = [1, 1]} : vector<8x128xf32> to vector<8x1xf32>
    %c52 = arith.constant 52 : index
    %c0_58 = arith.constant 0 : index
    %322 = vector.load %arg4[%c52, %c0_58] : memref<128x128xf32, #tpu.memory_space<vmem>>, vector<1x128xf32>
    %323 = vector.broadcast %321 : vector<8x1xf32> to vector<8x128xf32>
    %324 = vector.broadcast %322 : vector<1x128xf32> to vector<8x128xf32>
    %325 = arith.addf %323, %324 : vector<8x128xf32>
    %326 = arith.minimumf %320, %325 : vector<8x128xf32>
    %327 = vector.extract_strided_slice %7 {offsets = [0, 53], sizes = [8, 1], strides = [1, 1]} : vector<8x128xf32> to vector<8x1xf32>
    %c53 = arith.constant 53 : index
    %c0_59 = arith.constant 0 : index
    %328 = vector.load %arg4[%c53, %c0_59] : memref<128x128xf32, #tpu.memory_space<vmem>>, vector<1x128xf32>
    %329 = vector.broadcast %327 : vector<8x1xf32> to vector<8x128xf32>
    %330 = vector.broadcast %328 : vector<1x128xf32> to vector<8x128xf32>
    %331 = arith.addf %329, %330 : vector<8x128xf32>
    %332 = arith.minimumf %326, %331 : vector<8x128xf32>
    %333 = vector.extract_strided_slice %7 {offsets = [0, 54], sizes = [8, 1], strides = [1, 1]} : vector<8x128xf32> to vector<8x1xf32>
    %c54 = arith.constant 54 : index
    %c0_60 = arith.constant 0 : index
    %334 = vector.load %arg4[%c54, %c0_60] : memref<128x128xf32, #tpu.memory_space<vmem>>, vector<1x128xf32>
    %335 = vector.broadcast %333 : vector<8x1xf32> to vector<8x128xf32>
    %336 = vector.broadcast %334 : vector<1x128xf32> to vector<8x128xf32>
    %337 = arith.addf %335, %336 : vector<8x128xf32>
    %338 = arith.minimumf %332, %337 : vector<8x128xf32>
    %339 = vector.extract_strided_slice %7 {offsets = [0, 55], sizes = [8, 1], strides = [1, 1]} : vector<8x128xf32> to vector<8x1xf32>
    %c55 = arith.constant 55 : index
    %c0_61 = arith.constant 0 : index
    %340 = vector.load %arg4[%c55, %c0_61] : memref<128x128xf32, #tpu.memory_space<vmem>>, vector<1x128xf32>
    %341 = vector.broadcast %339 : vector<8x1xf32> to vector<8x128xf32>
    %342 = vector.broadcast %340 : vector<1x128xf32> to vector<8x128xf32>
    %343 = arith.addf %341, %342 : vector<8x128xf32>
    %344 = arith.minimumf %338, %343 : vector<8x128xf32>
    %345 = vector.extract_strided_slice %7 {offsets = [0, 56], sizes = [8, 1], strides = [1, 1]} : vector<8x128xf32> to vector<8x1xf32>
    %c56 = arith.constant 56 : index
    %c0_62 = arith.constant 0 : index
    %346 = vector.load %arg4[%c56, %c0_62] : memref<128x128xf32, #tpu.memory_space<vmem>>, vector<1x128xf32>
    %347 = vector.broadcast %345 : vector<8x1xf32> to vector<8x128xf32>
    %348 = vector.broadcast %346 : vector<1x128xf32> to vector<8x128xf32>
    %349 = arith.addf %347, %348 : vector<8x128xf32>
    %350 = arith.minimumf %344, %349 : vector<8x128xf32>
    %351 = vector.extract_strided_slice %7 {offsets = [0, 57], sizes = [8, 1], strides = [1, 1]} : vector<8x128xf32> to vector<8x1xf32>
    %c57 = arith.constant 57 : index
    %c0_63 = arith.constant 0 : index
    %352 = vector.load %arg4[%c57, %c0_63] : memref<128x128xf32, #tpu.memory_space<vmem>>, vector<1x128xf32>
    %353 = vector.broadcast %351 : vector<8x1xf32> to vector<8x128xf32>
    %354 = vector.broadcast %352 : vector<1x128xf32> to vector<8x128xf32>
    %355 = arith.addf %353, %354 : vector<8x128xf32>
    %356 = arith.minimumf %350, %355 : vector<8x128xf32>
    %357 = vector.extract_strided_slice %7 {offsets = [0, 58], sizes = [8, 1], strides = [1, 1]} : vector<8x128xf32> to vector<8x1xf32>
    %c58 = arith.constant 58 : index
    %c0_64 = arith.constant 0 : index
    %358 = vector.load %arg4[%c58, %c0_64] : memref<128x128xf32, #tpu.memory_space<vmem>>, vector<1x128xf32>
    %359 = vector.broadcast %357 : vector<8x1xf32> to vector<8x128xf32>
    %360 = vector.broadcast %358 : vector<1x128xf32> to vector<8x128xf32>
    %361 = arith.addf %359, %360 : vector<8x128xf32>
    %362 = arith.minimumf %356, %361 : vector<8x128xf32>
    %363 = vector.extract_strided_slice %7 {offsets = [0, 59], sizes = [8, 1], strides = [1, 1]} : vector<8x128xf32> to vector<8x1xf32>
    %c59 = arith.constant 59 : index
    %c0_65 = arith.constant 0 : index
    %364 = vector.load %arg4[%c59, %c0_65] : memref<128x128xf32, #tpu.memory_space<vmem>>, vector<1x128xf32>
    %365 = vector.broadcast %363 : vector<8x1xf32> to vector<8x128xf32>
    %366 = vector.broadcast %364 : vector<1x128xf32> to vector<8x128xf32>
    %367 = arith.addf %365, %366 : vector<8x128xf32>
    %368 = arith.minimumf %362, %367 : vector<8x128xf32>
    %369 = vector.extract_strided_slice %7 {offsets = [0, 60], sizes = [8, 1], strides = [1, 1]} : vector<8x128xf32> to vector<8x1xf32>
    %c60 = arith.constant 60 : index
    %c0_66 = arith.constant 0 : index
    %370 = vector.load %arg4[%c60, %c0_66] : memref<128x128xf32, #tpu.memory_space<vmem>>, vector<1x128xf32>
    %371 = vector.broadcast %369 : vector<8x1xf32> to vector<8x128xf32>
    %372 = vector.broadcast %370 : vector<1x128xf32> to vector<8x128xf32>
    %373 = arith.addf %371, %372 : vector<8x128xf32>
    %374 = arith.minimumf %368, %373 : vector<8x128xf32>
    %375 = vector.extract_strided_slice %7 {offsets = [0, 61], sizes = [8, 1], strides = [1, 1]} : vector<8x128xf32> to vector<8x1xf32>
    %c61 = arith.constant 61 : index
    %c0_67 = arith.constant 0 : index
    %376 = vector.load %arg4[%c61, %c0_67] : memref<128x128xf32, #tpu.memory_space<vmem>>, vector<1x128xf32>
    %377 = vector.broadcast %375 : vector<8x1xf32> to vector<8x128xf32>
    %378 = vector.broadcast %376 : vector<1x128xf32> to vector<8x128xf32>
    %379 = arith.addf %377, %378 : vector<8x128xf32>
    %380 = arith.minimumf %374, %379 : vector<8x128xf32>
    %381 = vector.extract_strided_slice %7 {offsets = [0, 62], sizes = [8, 1], strides = [1, 1]} : vector<8x128xf32> to vector<8x1xf32>
    %c62 = arith.constant 62 : index
    %c0_68 = arith.constant 0 : index
    %382 = vector.load %arg4[%c62, %c0_68] : memref<128x128xf32, #tpu.memory_space<vmem>>, vector<1x128xf32>
    %383 = vector.broadcast %381 : vector<8x1xf32> to vector<8x128xf32>
    %384 = vector.broadcast %382 : vector<1x128xf32> to vector<8x128xf32>
    %385 = arith.addf %383, %384 : vector<8x128xf32>
    %386 = arith.minimumf %380, %385 : vector<8x128xf32>
    %387 = vector.extract_strided_slice %7 {offsets = [0, 63], sizes = [8, 1], strides = [1, 1]} : vector<8x128xf32> to vector<8x1xf32>
    %c63 = arith.constant 63 : index
    %c0_69 = arith.constant 0 : index
    %388 = vector.load %arg4[%c63, %c0_69] : memref<128x128xf32, #tpu.memory_space<vmem>>, vector<1x128xf32>
    %389 = vector.broadcast %387 : vector<8x1xf32> to vector<8x128xf32>
    %390 = vector.broadcast %388 : vector<1x128xf32> to vector<8x128xf32>
    %391 = arith.addf %389, %390 : vector<8x128xf32>
    %392 = arith.minimumf %386, %391 : vector<8x128xf32>
    %393 = vector.extract_strided_slice %7 {offsets = [0, 64], sizes = [8, 1], strides = [1, 1]} : vector<8x128xf32> to vector<8x1xf32>
    %c64 = arith.constant 64 : index
    %c0_70 = arith.constant 0 : index
    %394 = vector.load %arg4[%c64, %c0_70] : memref<128x128xf32, #tpu.memory_space<vmem>>, vector<1x128xf32>
    %395 = vector.broadcast %393 : vector<8x1xf32> to vector<8x128xf32>
    %396 = vector.broadcast %394 : vector<1x128xf32> to vector<8x128xf32>
    %397 = arith.addf %395, %396 : vector<8x128xf32>
    %398 = arith.minimumf %392, %397 : vector<8x128xf32>
    %399 = vector.extract_strided_slice %7 {offsets = [0, 65], sizes = [8, 1], strides = [1, 1]} : vector<8x128xf32> to vector<8x1xf32>
    %c65 = arith.constant 65 : index
    %c0_71 = arith.constant 0 : index
    %400 = vector.load %arg4[%c65, %c0_71] : memref<128x128xf32, #tpu.memory_space<vmem>>, vector<1x128xf32>
    %401 = vector.broadcast %399 : vector<8x1xf32> to vector<8x128xf32>
    %402 = vector.broadcast %400 : vector<1x128xf32> to vector<8x128xf32>
    %403 = arith.addf %401, %402 : vector<8x128xf32>
    %404 = arith.minimumf %398, %403 : vector<8x128xf32>
    %405 = vector.extract_strided_slice %7 {offsets = [0, 66], sizes = [8, 1], strides = [1, 1]} : vector<8x128xf32> to vector<8x1xf32>
    %c66 = arith.constant 66 : index
    %c0_72 = arith.constant 0 : index
    %406 = vector.load %arg4[%c66, %c0_72] : memref<128x128xf32, #tpu.memory_space<vmem>>, vector<1x128xf32>
    %407 = vector.broadcast %405 : vector<8x1xf32> to vector<8x128xf32>
    %408 = vector.broadcast %406 : vector<1x128xf32> to vector<8x128xf32>
    %409 = arith.addf %407, %408 : vector<8x128xf32>
    %410 = arith.minimumf %404, %409 : vector<8x128xf32>
    %411 = vector.extract_strided_slice %7 {offsets = [0, 67], sizes = [8, 1], strides = [1, 1]} : vector<8x128xf32> to vector<8x1xf32>
    %c67 = arith.constant 67 : index
    %c0_73 = arith.constant 0 : index
    %412 = vector.load %arg4[%c67, %c0_73] : memref<128x128xf32, #tpu.memory_space<vmem>>, vector<1x128xf32>
    %413 = vector.broadcast %411 : vector<8x1xf32> to vector<8x128xf32>
    %414 = vector.broadcast %412 : vector<1x128xf32> to vector<8x128xf32>
    %415 = arith.addf %413, %414 : vector<8x128xf32>
    %416 = arith.minimumf %410, %415 : vector<8x128xf32>
    %417 = vector.extract_strided_slice %7 {offsets = [0, 68], sizes = [8, 1], strides = [1, 1]} : vector<8x128xf32> to vector<8x1xf32>
    %c68 = arith.constant 68 : index
    %c0_74 = arith.constant 0 : index
    %418 = vector.load %arg4[%c68, %c0_74] : memref<128x128xf32, #tpu.memory_space<vmem>>, vector<1x128xf32>
    %419 = vector.broadcast %417 : vector<8x1xf32> to vector<8x128xf32>
    %420 = vector.broadcast %418 : vector<1x128xf32> to vector<8x128xf32>
    %421 = arith.addf %419, %420 : vector<8x128xf32>
    %422 = arith.minimumf %416, %421 : vector<8x128xf32>
    %423 = vector.extract_strided_slice %7 {offsets = [0, 69], sizes = [8, 1], strides = [1, 1]} : vector<8x128xf32> to vector<8x1xf32>
    %c69 = arith.constant 69 : index
    %c0_75 = arith.constant 0 : index
    %424 = vector.load %arg4[%c69, %c0_75] : memref<128x128xf32, #tpu.memory_space<vmem>>, vector<1x128xf32>
    %425 = vector.broadcast %423 : vector<8x1xf32> to vector<8x128xf32>
    %426 = vector.broadcast %424 : vector<1x128xf32> to vector<8x128xf32>
    %427 = arith.addf %425, %426 : vector<8x128xf32>
    %428 = arith.minimumf %422, %427 : vector<8x128xf32>
    %429 = vector.extract_strided_slice %7 {offsets = [0, 70], sizes = [8, 1], strides = [1, 1]} : vector<8x128xf32> to vector<8x1xf32>
    %c70 = arith.constant 70 : index
    %c0_76 = arith.constant 0 : index
    %430 = vector.load %arg4[%c70, %c0_76] : memref<128x128xf32, #tpu.memory_space<vmem>>, vector<1x128xf32>
    %431 = vector.broadcast %429 : vector<8x1xf32> to vector<8x128xf32>
    %432 = vector.broadcast %430 : vector<1x128xf32> to vector<8x128xf32>
    %433 = arith.addf %431, %432 : vector<8x128xf32>
    %434 = arith.minimumf %428, %433 : vector<8x128xf32>
    %435 = vector.extract_strided_slice %7 {offsets = [0, 71], sizes = [8, 1], strides = [1, 1]} : vector<8x128xf32> to vector<8x1xf32>
    %c71 = arith.constant 71 : index
    %c0_77 = arith.constant 0 : index
    %436 = vector.load %arg4[%c71, %c0_77] : memref<128x128xf32, #tpu.memory_space<vmem>>, vector<1x128xf32>
    %437 = vector.broadcast %435 : vector<8x1xf32> to vector<8x128xf32>
    %438 = vector.broadcast %436 : vector<1x128xf32> to vector<8x128xf32>
    %439 = arith.addf %437, %438 : vector<8x128xf32>
    %440 = arith.minimumf %434, %439 : vector<8x128xf32>
    %441 = vector.extract_strided_slice %7 {offsets = [0, 72], sizes = [8, 1], strides = [1, 1]} : vector<8x128xf32> to vector<8x1xf32>
    %c72 = arith.constant 72 : index
    %c0_78 = arith.constant 0 : index
    %442 = vector.load %arg4[%c72, %c0_78] : memref<128x128xf32, #tpu.memory_space<vmem>>, vector<1x128xf32>
    %443 = vector.broadcast %441 : vector<8x1xf32> to vector<8x128xf32>
    %444 = vector.broadcast %442 : vector<1x128xf32> to vector<8x128xf32>
    %445 = arith.addf %443, %444 : vector<8x128xf32>
    %446 = arith.minimumf %440, %445 : vector<8x128xf32>
    %447 = vector.extract_strided_slice %7 {offsets = [0, 73], sizes = [8, 1], strides = [1, 1]} : vector<8x128xf32> to vector<8x1xf32>
    %c73 = arith.constant 73 : index
    %c0_79 = arith.constant 0 : index
    %448 = vector.load %arg4[%c73, %c0_79] : memref<128x128xf32, #tpu.memory_space<vmem>>, vector<1x128xf32>
    %449 = vector.broadcast %447 : vector<8x1xf32> to vector<8x128xf32>
    %450 = vector.broadcast %448 : vector<1x128xf32> to vector<8x128xf32>
    %451 = arith.addf %449, %450 : vector<8x128xf32>
    %452 = arith.minimumf %446, %451 : vector<8x128xf32>
    %453 = vector.extract_strided_slice %7 {offsets = [0, 74], sizes = [8, 1], strides = [1, 1]} : vector<8x128xf32> to vector<8x1xf32>
    %c74 = arith.constant 74 : index
    %c0_80 = arith.constant 0 : index
    %454 = vector.load %arg4[%c74, %c0_80] : memref<128x128xf32, #tpu.memory_space<vmem>>, vector<1x128xf32>
    %455 = vector.broadcast %453 : vector<8x1xf32> to vector<8x128xf32>
    %456 = vector.broadcast %454 : vector<1x128xf32> to vector<8x128xf32>
    %457 = arith.addf %455, %456 : vector<8x128xf32>
    %458 = arith.minimumf %452, %457 : vector<8x128xf32>
    %459 = vector.extract_strided_slice %7 {offsets = [0, 75], sizes = [8, 1], strides = [1, 1]} : vector<8x128xf32> to vector<8x1xf32>
    %c75 = arith.constant 75 : index
    %c0_81 = arith.constant 0 : index
    %460 = vector.load %arg4[%c75, %c0_81] : memref<128x128xf32, #tpu.memory_space<vmem>>, vector<1x128xf32>
    %461 = vector.broadcast %459 : vector<8x1xf32> to vector<8x128xf32>
    %462 = vector.broadcast %460 : vector<1x128xf32> to vector<8x128xf32>
    %463 = arith.addf %461, %462 : vector<8x128xf32>
    %464 = arith.minimumf %458, %463 : vector<8x128xf32>
    %465 = vector.extract_strided_slice %7 {offsets = [0, 76], sizes = [8, 1], strides = [1, 1]} : vector<8x128xf32> to vector<8x1xf32>
    %c76 = arith.constant 76 : index
    %c0_82 = arith.constant 0 : index
    %466 = vector.load %arg4[%c76, %c0_82] : memref<128x128xf32, #tpu.memory_space<vmem>>, vector<1x128xf32>
    %467 = vector.broadcast %465 : vector<8x1xf32> to vector<8x128xf32>
    %468 = vector.broadcast %466 : vector<1x128xf32> to vector<8x128xf32>
    %469 = arith.addf %467, %468 : vector<8x128xf32>
    %470 = arith.minimumf %464, %469 : vector<8x128xf32>
    %471 = vector.extract_strided_slice %7 {offsets = [0, 77], sizes = [8, 1], strides = [1, 1]} : vector<8x128xf32> to vector<8x1xf32>
    %c77 = arith.constant 77 : index
    %c0_83 = arith.constant 0 : index
    %472 = vector.load %arg4[%c77, %c0_83] : memref<128x128xf32, #tpu.memory_space<vmem>>, vector<1x128xf32>
    %473 = vector.broadcast %471 : vector<8x1xf32> to vector<8x128xf32>
    %474 = vector.broadcast %472 : vector<1x128xf32> to vector<8x128xf32>
    %475 = arith.addf %473, %474 : vector<8x128xf32>
    %476 = arith.minimumf %470, %475 : vector<8x128xf32>
    %477 = vector.extract_strided_slice %7 {offsets = [0, 78], sizes = [8, 1], strides = [1, 1]} : vector<8x128xf32> to vector<8x1xf32>
    %c78 = arith.constant 78 : index
    %c0_84 = arith.constant 0 : index
    %478 = vector.load %arg4[%c78, %c0_84] : memref<128x128xf32, #tpu.memory_space<vmem>>, vector<1x128xf32>
    %479 = vector.broadcast %477 : vector<8x1xf32> to vector<8x128xf32>
    %480 = vector.broadcast %478 : vector<1x128xf32> to vector<8x128xf32>
    %481 = arith.addf %479, %480 : vector<8x128xf32>
    %482 = arith.minimumf %476, %481 : vector<8x128xf32>
    %483 = vector.extract_strided_slice %7 {offsets = [0, 79], sizes = [8, 1], strides = [1, 1]} : vector<8x128xf32> to vector<8x1xf32>
    %c79 = arith.constant 79 : index
    %c0_85 = arith.constant 0 : index
    %484 = vector.load %arg4[%c79, %c0_85] : memref<128x128xf32, #tpu.memory_space<vmem>>, vector<1x128xf32>
    %485 = vector.broadcast %483 : vector<8x1xf32> to vector<8x128xf32>
    %486 = vector.broadcast %484 : vector<1x128xf32> to vector<8x128xf32>
    %487 = arith.addf %485, %486 : vector<8x128xf32>
    %488 = arith.minimumf %482, %487 : vector<8x128xf32>
    %489 = vector.extract_strided_slice %7 {offsets = [0, 80], sizes = [8, 1], strides = [1, 1]} : vector<8x128xf32> to vector<8x1xf32>
    %c80 = arith.constant 80 : index
    %c0_86 = arith.constant 0 : index
    %490 = vector.load %arg4[%c80, %c0_86] : memref<128x128xf32, #tpu.memory_space<vmem>>, vector<1x128xf32>
    %491 = vector.broadcast %489 : vector<8x1xf32> to vector<8x128xf32>
    %492 = vector.broadcast %490 : vector<1x128xf32> to vector<8x128xf32>
    %493 = arith.addf %491, %492 : vector<8x128xf32>
    %494 = arith.minimumf %488, %493 : vector<8x128xf32>
    %495 = vector.extract_strided_slice %7 {offsets = [0, 81], sizes = [8, 1], strides = [1, 1]} : vector<8x128xf32> to vector<8x1xf32>
    %c81 = arith.constant 81 : index
    %c0_87 = arith.constant 0 : index
    %496 = vector.load %arg4[%c81, %c0_87] : memref<128x128xf32, #tpu.memory_space<vmem>>, vector<1x128xf32>
    %497 = vector.broadcast %495 : vector<8x1xf32> to vector<8x128xf32>
    %498 = vector.broadcast %496 : vector<1x128xf32> to vector<8x128xf32>
    %499 = arith.addf %497, %498 : vector<8x128xf32>
    %500 = arith.minimumf %494, %499 : vector<8x128xf32>
    %501 = vector.extract_strided_slice %7 {offsets = [0, 82], sizes = [8, 1], strides = [1, 1]} : vector<8x128xf32> to vector<8x1xf32>
    %c82 = arith.constant 82 : index
    %c0_88 = arith.constant 0 : index
    %502 = vector.load %arg4[%c82, %c0_88] : memref<128x128xf32, #tpu.memory_space<vmem>>, vector<1x128xf32>
    %503 = vector.broadcast %501 : vector<8x1xf32> to vector<8x128xf32>
    %504 = vector.broadcast %502 : vector<1x128xf32> to vector<8x128xf32>
    %505 = arith.addf %503, %504 : vector<8x128xf32>
    %506 = arith.minimumf %500, %505 : vector<8x128xf32>
    %507 = vector.extract_strided_slice %7 {offsets = [0, 83], sizes = [8, 1], strides = [1, 1]} : vector<8x128xf32> to vector<8x1xf32>
    %c83 = arith.constant 83 : index
    %c0_89 = arith.constant 0 : index
    %508 = vector.load %arg4[%c83, %c0_89] : memref<128x128xf32, #tpu.memory_space<vmem>>, vector<1x128xf32>
    %509 = vector.broadcast %507 : vector<8x1xf32> to vector<8x128xf32>
    %510 = vector.broadcast %508 : vector<1x128xf32> to vector<8x128xf32>
    %511 = arith.addf %509, %510 : vector<8x128xf32>
    %512 = arith.minimumf %506, %511 : vector<8x128xf32>
    %513 = vector.extract_strided_slice %7 {offsets = [0, 84], sizes = [8, 1], strides = [1, 1]} : vector<8x128xf32> to vector<8x1xf32>
    %c84 = arith.constant 84 : index
    %c0_90 = arith.constant 0 : index
    %514 = vector.load %arg4[%c84, %c0_90] : memref<128x128xf32, #tpu.memory_space<vmem>>, vector<1x128xf32>
    %515 = vector.broadcast %513 : vector<8x1xf32> to vector<8x128xf32>
    %516 = vector.broadcast %514 : vector<1x128xf32> to vector<8x128xf32>
    %517 = arith.addf %515, %516 : vector<8x128xf32>
    %518 = arith.minimumf %512, %517 : vector<8x128xf32>
    %519 = vector.extract_strided_slice %7 {offsets = [0, 85], sizes = [8, 1], strides = [1, 1]} : vector<8x128xf32> to vector<8x1xf32>
    %c85 = arith.constant 85 : index
    %c0_91 = arith.constant 0 : index
    %520 = vector.load %arg4[%c85, %c0_91] : memref<128x128xf32, #tpu.memory_space<vmem>>, vector<1x128xf32>
    %521 = vector.broadcast %519 : vector<8x1xf32> to vector<8x128xf32>
    %522 = vector.broadcast %520 : vector<1x128xf32> to vector<8x128xf32>
    %523 = arith.addf %521, %522 : vector<8x128xf32>
    %524 = arith.minimumf %518, %523 : vector<8x128xf32>
    %525 = vector.extract_strided_slice %7 {offsets = [0, 86], sizes = [8, 1], strides = [1, 1]} : vector<8x128xf32> to vector<8x1xf32>
    %c86 = arith.constant 86 : index
    %c0_92 = arith.constant 0 : index
    %526 = vector.load %arg4[%c86, %c0_92] : memref<128x128xf32, #tpu.memory_space<vmem>>, vector<1x128xf32>
    %527 = vector.broadcast %525 : vector<8x1xf32> to vector<8x128xf32>
    %528 = vector.broadcast %526 : vector<1x128xf32> to vector<8x128xf32>
    %529 = arith.addf %527, %528 : vector<8x128xf32>
    %530 = arith.minimumf %524, %529 : vector<8x128xf32>
    %531 = vector.extract_strided_slice %7 {offsets = [0, 87], sizes = [8, 1], strides = [1, 1]} : vector<8x128xf32> to vector<8x1xf32>
    %c87 = arith.constant 87 : index
    %c0_93 = arith.constant 0 : index
    %532 = vector.load %arg4[%c87, %c0_93] : memref<128x128xf32, #tpu.memory_space<vmem>>, vector<1x128xf32>
    %533 = vector.broadcast %531 : vector<8x1xf32> to vector<8x128xf32>
    %534 = vector.broadcast %532 : vector<1x128xf32> to vector<8x128xf32>
    %535 = arith.addf %533, %534 : vector<8x128xf32>
    %536 = arith.minimumf %530, %535 : vector<8x128xf32>
    %537 = vector.extract_strided_slice %7 {offsets = [0, 88], sizes = [8, 1], strides = [1, 1]} : vector<8x128xf32> to vector<8x1xf32>
    %c88 = arith.constant 88 : index
    %c0_94 = arith.constant 0 : index
    %538 = vector.load %arg4[%c88, %c0_94] : memref<128x128xf32, #tpu.memory_space<vmem>>, vector<1x128xf32>
    %539 = vector.broadcast %537 : vector<8x1xf32> to vector<8x128xf32>
    %540 = vector.broadcast %538 : vector<1x128xf32> to vector<8x128xf32>
    %541 = arith.addf %539, %540 : vector<8x128xf32>
    %542 = arith.minimumf %536, %541 : vector<8x128xf32>
    %543 = vector.extract_strided_slice %7 {offsets = [0, 89], sizes = [8, 1], strides = [1, 1]} : vector<8x128xf32> to vector<8x1xf32>
    %c89 = arith.constant 89 : index
    %c0_95 = arith.constant 0 : index
    %544 = vector.load %arg4[%c89, %c0_95] : memref<128x128xf32, #tpu.memory_space<vmem>>, vector<1x128xf32>
    %545 = vector.broadcast %543 : vector<8x1xf32> to vector<8x128xf32>
    %546 = vector.broadcast %544 : vector<1x128xf32> to vector<8x128xf32>
    %547 = arith.addf %545, %546 : vector<8x128xf32>
    %548 = arith.minimumf %542, %547 : vector<8x128xf32>
    %549 = vector.extract_strided_slice %7 {offsets = [0, 90], sizes = [8, 1], strides = [1, 1]} : vector<8x128xf32> to vector<8x1xf32>
    %c90 = arith.constant 90 : index
    %c0_96 = arith.constant 0 : index
    %550 = vector.load %arg4[%c90, %c0_96] : memref<128x128xf32, #tpu.memory_space<vmem>>, vector<1x128xf32>
    %551 = vector.broadcast %549 : vector<8x1xf32> to vector<8x128xf32>
    %552 = vector.broadcast %550 : vector<1x128xf32> to vector<8x128xf32>
    %553 = arith.addf %551, %552 : vector<8x128xf32>
    %554 = arith.minimumf %548, %553 : vector<8x128xf32>
    %555 = vector.extract_strided_slice %7 {offsets = [0, 91], sizes = [8, 1], strides = [1, 1]} : vector<8x128xf32> to vector<8x1xf32>
    %c91 = arith.constant 91 : index
    %c0_97 = arith.constant 0 : index
    %556 = vector.load %arg4[%c91, %c0_97] : memref<128x128xf32, #tpu.memory_space<vmem>>, vector<1x128xf32>
    %557 = vector.broadcast %555 : vector<8x1xf32> to vector<8x128xf32>
    %558 = vector.broadcast %556 : vector<1x128xf32> to vector<8x128xf32>
    %559 = arith.addf %557, %558 : vector<8x128xf32>
    %560 = arith.minimumf %554, %559 : vector<8x128xf32>
    %561 = vector.extract_strided_slice %7 {offsets = [0, 92], sizes = [8, 1], strides = [1, 1]} : vector<8x128xf32> to vector<8x1xf32>
    %c92 = arith.constant 92 : index
    %c0_98 = arith.constant 0 : index
    %562 = vector.load %arg4[%c92, %c0_98] : memref<128x128xf32, #tpu.memory_space<vmem>>, vector<1x128xf32>
    %563 = vector.broadcast %561 : vector<8x1xf32> to vector<8x128xf32>
    %564 = vector.broadcast %562 : vector<1x128xf32> to vector<8x128xf32>
    %565 = arith.addf %563, %564 : vector<8x128xf32>
    %566 = arith.minimumf %560, %565 : vector<8x128xf32>
    %567 = vector.extract_strided_slice %7 {offsets = [0, 93], sizes = [8, 1], strides = [1, 1]} : vector<8x128xf32> to vector<8x1xf32>
    %c93 = arith.constant 93 : index
    %c0_99 = arith.constant 0 : index
    %568 = vector.load %arg4[%c93, %c0_99] : memref<128x128xf32, #tpu.memory_space<vmem>>, vector<1x128xf32>
    %569 = vector.broadcast %567 : vector<8x1xf32> to vector<8x128xf32>
    %570 = vector.broadcast %568 : vector<1x128xf32> to vector<8x128xf32>
    %571 = arith.addf %569, %570 : vector<8x128xf32>
    %572 = arith.minimumf %566, %571 : vector<8x128xf32>
    %573 = vector.extract_strided_slice %7 {offsets = [0, 94], sizes = [8, 1], strides = [1, 1]} : vector<8x128xf32> to vector<8x1xf32>
    %c94 = arith.constant 94 : index
    %c0_100 = arith.constant 0 : index
    %574 = vector.load %arg4[%c94, %c0_100] : memref<128x128xf32, #tpu.memory_space<vmem>>, vector<1x128xf32>
    %575 = vector.broadcast %573 : vector<8x1xf32> to vector<8x128xf32>
    %576 = vector.broadcast %574 : vector<1x128xf32> to vector<8x128xf32>
    %577 = arith.addf %575, %576 : vector<8x128xf32>
    %578 = arith.minimumf %572, %577 : vector<8x128xf32>
    %579 = vector.extract_strided_slice %7 {offsets = [0, 95], sizes = [8, 1], strides = [1, 1]} : vector<8x128xf32> to vector<8x1xf32>
    %c95 = arith.constant 95 : index
    %c0_101 = arith.constant 0 : index
    %580 = vector.load %arg4[%c95, %c0_101] : memref<128x128xf32, #tpu.memory_space<vmem>>, vector<1x128xf32>
    %581 = vector.broadcast %579 : vector<8x1xf32> to vector<8x128xf32>
    %582 = vector.broadcast %580 : vector<1x128xf32> to vector<8x128xf32>
    %583 = arith.addf %581, %582 : vector<8x128xf32>
    %584 = arith.minimumf %578, %583 : vector<8x128xf32>
    %585 = vector.extract_strided_slice %7 {offsets = [0, 96], sizes = [8, 1], strides = [1, 1]} : vector<8x128xf32> to vector<8x1xf32>
    %c96 = arith.constant 96 : index
    %c0_102 = arith.constant 0 : index
    %586 = vector.load %arg4[%c96, %c0_102] : memref<128x128xf32, #tpu.memory_space<vmem>>, vector<1x128xf32>
    %587 = vector.broadcast %585 : vector<8x1xf32> to vector<8x128xf32>
    %588 = vector.broadcast %586 : vector<1x128xf32> to vector<8x128xf32>
    %589 = arith.addf %587, %588 : vector<8x128xf32>
    %590 = arith.minimumf %584, %589 : vector<8x128xf32>
    %591 = vector.extract_strided_slice %7 {offsets = [0, 97], sizes = [8, 1], strides = [1, 1]} : vector<8x128xf32> to vector<8x1xf32>
    %c97 = arith.constant 97 : index
    %c0_103 = arith.constant 0 : index
    %592 = vector.load %arg4[%c97, %c0_103] : memref<128x128xf32, #tpu.memory_space<vmem>>, vector<1x128xf32>
    %593 = vector.broadcast %591 : vector<8x1xf32> to vector<8x128xf32>
    %594 = vector.broadcast %592 : vector<1x128xf32> to vector<8x128xf32>
    %595 = arith.addf %593, %594 : vector<8x128xf32>
    %596 = arith.minimumf %590, %595 : vector<8x128xf32>
    %597 = vector.extract_strided_slice %7 {offsets = [0, 98], sizes = [8, 1], strides = [1, 1]} : vector<8x128xf32> to vector<8x1xf32>
    %c98 = arith.constant 98 : index
    %c0_104 = arith.constant 0 : index
    %598 = vector.load %arg4[%c98, %c0_104] : memref<128x128xf32, #tpu.memory_space<vmem>>, vector<1x128xf32>
    %599 = vector.broadcast %597 : vector<8x1xf32> to vector<8x128xf32>
    %600 = vector.broadcast %598 : vector<1x128xf32> to vector<8x128xf32>
    %601 = arith.addf %599, %600 : vector<8x128xf32>
    %602 = arith.minimumf %596, %601 : vector<8x128xf32>
    %603 = vector.extract_strided_slice %7 {offsets = [0, 99], sizes = [8, 1], strides = [1, 1]} : vector<8x128xf32> to vector<8x1xf32>
    %c99 = arith.constant 99 : index
    %c0_105 = arith.constant 0 : index
    %604 = vector.load %arg4[%c99, %c0_105] : memref<128x128xf32, #tpu.memory_space<vmem>>, vector<1x128xf32>
    %605 = vector.broadcast %603 : vector<8x1xf32> to vector<8x128xf32>
    %606 = vector.broadcast %604 : vector<1x128xf32> to vector<8x128xf32>
    %607 = arith.addf %605, %606 : vector<8x128xf32>
    %608 = arith.minimumf %602, %607 : vector<8x128xf32>
    %609 = vector.extract_strided_slice %7 {offsets = [0, 100], sizes = [8, 1], strides = [1, 1]} : vector<8x128xf32> to vector<8x1xf32>
    %c100 = arith.constant 100 : index
    %c0_106 = arith.constant 0 : index
    %610 = vector.load %arg4[%c100, %c0_106] : memref<128x128xf32, #tpu.memory_space<vmem>>, vector<1x128xf32>
    %611 = vector.broadcast %609 : vector<8x1xf32> to vector<8x128xf32>
    %612 = vector.broadcast %610 : vector<1x128xf32> to vector<8x128xf32>
    %613 = arith.addf %611, %612 : vector<8x128xf32>
    %614 = arith.minimumf %608, %613 : vector<8x128xf32>
    %615 = vector.extract_strided_slice %7 {offsets = [0, 101], sizes = [8, 1], strides = [1, 1]} : vector<8x128xf32> to vector<8x1xf32>
    %c101 = arith.constant 101 : index
    %c0_107 = arith.constant 0 : index
    %616 = vector.load %arg4[%c101, %c0_107] : memref<128x128xf32, #tpu.memory_space<vmem>>, vector<1x128xf32>
    %617 = vector.broadcast %615 : vector<8x1xf32> to vector<8x128xf32>
    %618 = vector.broadcast %616 : vector<1x128xf32> to vector<8x128xf32>
    %619 = arith.addf %617, %618 : vector<8x128xf32>
    %620 = arith.minimumf %614, %619 : vector<8x128xf32>
    %621 = vector.extract_strided_slice %7 {offsets = [0, 102], sizes = [8, 1], strides = [1, 1]} : vector<8x128xf32> to vector<8x1xf32>
    %c102 = arith.constant 102 : index
    %c0_108 = arith.constant 0 : index
    %622 = vector.load %arg4[%c102, %c0_108] : memref<128x128xf32, #tpu.memory_space<vmem>>, vector<1x128xf32>
    %623 = vector.broadcast %621 : vector<8x1xf32> to vector<8x128xf32>
    %624 = vector.broadcast %622 : vector<1x128xf32> to vector<8x128xf32>
    %625 = arith.addf %623, %624 : vector<8x128xf32>
    %626 = arith.minimumf %620, %625 : vector<8x128xf32>
    %627 = vector.extract_strided_slice %7 {offsets = [0, 103], sizes = [8, 1], strides = [1, 1]} : vector<8x128xf32> to vector<8x1xf32>
    %c103 = arith.constant 103 : index
    %c0_109 = arith.constant 0 : index
    %628 = vector.load %arg4[%c103, %c0_109] : memref<128x128xf32, #tpu.memory_space<vmem>>, vector<1x128xf32>
    %629 = vector.broadcast %627 : vector<8x1xf32> to vector<8x128xf32>
    %630 = vector.broadcast %628 : vector<1x128xf32> to vector<8x128xf32>
    %631 = arith.addf %629, %630 : vector<8x128xf32>
    %632 = arith.minimumf %626, %631 : vector<8x128xf32>
    %633 = vector.extract_strided_slice %7 {offsets = [0, 104], sizes = [8, 1], strides = [1, 1]} : vector<8x128xf32> to vector<8x1xf32>
    %c104 = arith.constant 104 : index
    %c0_110 = arith.constant 0 : index
    %634 = vector.load %arg4[%c104, %c0_110] : memref<128x128xf32, #tpu.memory_space<vmem>>, vector<1x128xf32>
    %635 = vector.broadcast %633 : vector<8x1xf32> to vector<8x128xf32>
    %636 = vector.broadcast %634 : vector<1x128xf32> to vector<8x128xf32>
    %637 = arith.addf %635, %636 : vector<8x128xf32>
    %638 = arith.minimumf %632, %637 : vector<8x128xf32>
    %639 = vector.extract_strided_slice %7 {offsets = [0, 105], sizes = [8, 1], strides = [1, 1]} : vector<8x128xf32> to vector<8x1xf32>
    %c105 = arith.constant 105 : index
    %c0_111 = arith.constant 0 : index
    %640 = vector.load %arg4[%c105, %c0_111] : memref<128x128xf32, #tpu.memory_space<vmem>>, vector<1x128xf32>
    %641 = vector.broadcast %639 : vector<8x1xf32> to vector<8x128xf32>
    %642 = vector.broadcast %640 : vector<1x128xf32> to vector<8x128xf32>
    %643 = arith.addf %641, %642 : vector<8x128xf32>
    %644 = arith.minimumf %638, %643 : vector<8x128xf32>
    %645 = vector.extract_strided_slice %7 {offsets = [0, 106], sizes = [8, 1], strides = [1, 1]} : vector<8x128xf32> to vector<8x1xf32>
    %c106 = arith.constant 106 : index
    %c0_112 = arith.constant 0 : index
    %646 = vector.load %arg4[%c106, %c0_112] : memref<128x128xf32, #tpu.memory_space<vmem>>, vector<1x128xf32>
    %647 = vector.broadcast %645 : vector<8x1xf32> to vector<8x128xf32>
    %648 = vector.broadcast %646 : vector<1x128xf32> to vector<8x128xf32>
    %649 = arith.addf %647, %648 : vector<8x128xf32>
    %650 = arith.minimumf %644, %649 : vector<8x128xf32>
    %651 = vector.extract_strided_slice %7 {offsets = [0, 107], sizes = [8, 1], strides = [1, 1]} : vector<8x128xf32> to vector<8x1xf32>
    %c107 = arith.constant 107 : index
    %c0_113 = arith.constant 0 : index
    %652 = vector.load %arg4[%c107, %c0_113] : memref<128x128xf32, #tpu.memory_space<vmem>>, vector<1x128xf32>
    %653 = vector.broadcast %651 : vector<8x1xf32> to vector<8x128xf32>
    %654 = vector.broadcast %652 : vector<1x128xf32> to vector<8x128xf32>
    %655 = arith.addf %653, %654 : vector<8x128xf32>
    %656 = arith.minimumf %650, %655 : vector<8x128xf32>
    %657 = vector.extract_strided_slice %7 {offsets = [0, 108], sizes = [8, 1], strides = [1, 1]} : vector<8x128xf32> to vector<8x1xf32>
    %c108 = arith.constant 108 : index
    %c0_114 = arith.constant 0 : index
    %658 = vector.load %arg4[%c108, %c0_114] : memref<128x128xf32, #tpu.memory_space<vmem>>, vector<1x128xf32>
    %659 = vector.broadcast %657 : vector<8x1xf32> to vector<8x128xf32>
    %660 = vector.broadcast %658 : vector<1x128xf32> to vector<8x128xf32>
    %661 = arith.addf %659, %660 : vector<8x128xf32>
    %662 = arith.minimumf %656, %661 : vector<8x128xf32>
    %663 = vector.extract_strided_slice %7 {offsets = [0, 109], sizes = [8, 1], strides = [1, 1]} : vector<8x128xf32> to vector<8x1xf32>
    %c109 = arith.constant 109 : index
    %c0_115 = arith.constant 0 : index
    %664 = vector.load %arg4[%c109, %c0_115] : memref<128x128xf32, #tpu.memory_space<vmem>>, vector<1x128xf32>
    %665 = vector.broadcast %663 : vector<8x1xf32> to vector<8x128xf32>
    %666 = vector.broadcast %664 : vector<1x128xf32> to vector<8x128xf32>
    %667 = arith.addf %665, %666 : vector<8x128xf32>
    %668 = arith.minimumf %662, %667 : vector<8x128xf32>
    %669 = vector.extract_strided_slice %7 {offsets = [0, 110], sizes = [8, 1], strides = [1, 1]} : vector<8x128xf32> to vector<8x1xf32>
    %c110 = arith.constant 110 : index
    %c0_116 = arith.constant 0 : index
    %670 = vector.load %arg4[%c110, %c0_116] : memref<128x128xf32, #tpu.memory_space<vmem>>, vector<1x128xf32>
    %671 = vector.broadcast %669 : vector<8x1xf32> to vector<8x128xf32>
    %672 = vector.broadcast %670 : vector<1x128xf32> to vector<8x128xf32>
    %673 = arith.addf %671, %672 : vector<8x128xf32>
    %674 = arith.minimumf %668, %673 : vector<8x128xf32>
    %675 = vector.extract_strided_slice %7 {offsets = [0, 111], sizes = [8, 1], strides = [1, 1]} : vector<8x128xf32> to vector<8x1xf32>
    %c111 = arith.constant 111 : index
    %c0_117 = arith.constant 0 : index
    %676 = vector.load %arg4[%c111, %c0_117] : memref<128x128xf32, #tpu.memory_space<vmem>>, vector<1x128xf32>
    %677 = vector.broadcast %675 : vector<8x1xf32> to vector<8x128xf32>
    %678 = vector.broadcast %676 : vector<1x128xf32> to vector<8x128xf32>
    %679 = arith.addf %677, %678 : vector<8x128xf32>
    %680 = arith.minimumf %674, %679 : vector<8x128xf32>
    %681 = vector.extract_strided_slice %7 {offsets = [0, 112], sizes = [8, 1], strides = [1, 1]} : vector<8x128xf32> to vector<8x1xf32>
    %c112 = arith.constant 112 : index
    %c0_118 = arith.constant 0 : index
    %682 = vector.load %arg4[%c112, %c0_118] : memref<128x128xf32, #tpu.memory_space<vmem>>, vector<1x128xf32>
    %683 = vector.broadcast %681 : vector<8x1xf32> to vector<8x128xf32>
    %684 = vector.broadcast %682 : vector<1x128xf32> to vector<8x128xf32>
    %685 = arith.addf %683, %684 : vector<8x128xf32>
    %686 = arith.minimumf %680, %685 : vector<8x128xf32>
    %687 = vector.extract_strided_slice %7 {offsets = [0, 113], sizes = [8, 1], strides = [1, 1]} : vector<8x128xf32> to vector<8x1xf32>
    %c113 = arith.constant 113 : index
    %c0_119 = arith.constant 0 : index
    %688 = vector.load %arg4[%c113, %c0_119] : memref<128x128xf32, #tpu.memory_space<vmem>>, vector<1x128xf32>
    %689 = vector.broadcast %687 : vector<8x1xf32> to vector<8x128xf32>
    %690 = vector.broadcast %688 : vector<1x128xf32> to vector<8x128xf32>
    %691 = arith.addf %689, %690 : vector<8x128xf32>
    %692 = arith.minimumf %686, %691 : vector<8x128xf32>
    %693 = vector.extract_strided_slice %7 {offsets = [0, 114], sizes = [8, 1], strides = [1, 1]} : vector<8x128xf32> to vector<8x1xf32>
    %c114 = arith.constant 114 : index
    %c0_120 = arith.constant 0 : index
    %694 = vector.load %arg4[%c114, %c0_120] : memref<128x128xf32, #tpu.memory_space<vmem>>, vector<1x128xf32>
    %695 = vector.broadcast %693 : vector<8x1xf32> to vector<8x128xf32>
    %696 = vector.broadcast %694 : vector<1x128xf32> to vector<8x128xf32>
    %697 = arith.addf %695, %696 : vector<8x128xf32>
    %698 = arith.minimumf %692, %697 : vector<8x128xf32>
    %699 = vector.extract_strided_slice %7 {offsets = [0, 115], sizes = [8, 1], strides = [1, 1]} : vector<8x128xf32> to vector<8x1xf32>
    %c115 = arith.constant 115 : index
    %c0_121 = arith.constant 0 : index
    %700 = vector.load %arg4[%c115, %c0_121] : memref<128x128xf32, #tpu.memory_space<vmem>>, vector<1x128xf32>
    %701 = vector.broadcast %699 : vector<8x1xf32> to vector<8x128xf32>
    %702 = vector.broadcast %700 : vector<1x128xf32> to vector<8x128xf32>
    %703 = arith.addf %701, %702 : vector<8x128xf32>
    %704 = arith.minimumf %698, %703 : vector<8x128xf32>
    %705 = vector.extract_strided_slice %7 {offsets = [0, 116], sizes = [8, 1], strides = [1, 1]} : vector<8x128xf32> to vector<8x1xf32>
    %c116 = arith.constant 116 : index
    %c0_122 = arith.constant 0 : index
    %706 = vector.load %arg4[%c116, %c0_122] : memref<128x128xf32, #tpu.memory_space<vmem>>, vector<1x128xf32>
    %707 = vector.broadcast %705 : vector<8x1xf32> to vector<8x128xf32>
    %708 = vector.broadcast %706 : vector<1x128xf32> to vector<8x128xf32>
    %709 = arith.addf %707, %708 : vector<8x128xf32>
    %710 = arith.minimumf %704, %709 : vector<8x128xf32>
    %711 = vector.extract_strided_slice %7 {offsets = [0, 117], sizes = [8, 1], strides = [1, 1]} : vector<8x128xf32> to vector<8x1xf32>
    %c117 = arith.constant 117 : index
    %c0_123 = arith.constant 0 : index
    %712 = vector.load %arg4[%c117, %c0_123] : memref<128x128xf32, #tpu.memory_space<vmem>>, vector<1x128xf32>
    %713 = vector.broadcast %711 : vector<8x1xf32> to vector<8x128xf32>
    %714 = vector.broadcast %712 : vector<1x128xf32> to vector<8x128xf32>
    %715 = arith.addf %713, %714 : vector<8x128xf32>
    %716 = arith.minimumf %710, %715 : vector<8x128xf32>
    %717 = vector.extract_strided_slice %7 {offsets = [0, 118], sizes = [8, 1], strides = [1, 1]} : vector<8x128xf32> to vector<8x1xf32>
    %c118 = arith.constant 118 : index
    %c0_124 = arith.constant 0 : index
    %718 = vector.load %arg4[%c118, %c0_124] : memref<128x128xf32, #tpu.memory_space<vmem>>, vector<1x128xf32>
    %719 = vector.broadcast %717 : vector<8x1xf32> to vector<8x128xf32>
    %720 = vector.broadcast %718 : vector<1x128xf32> to vector<8x128xf32>
    %721 = arith.addf %719, %720 : vector<8x128xf32>
    %722 = arith.minimumf %716, %721 : vector<8x128xf32>
    %723 = vector.extract_strided_slice %7 {offsets = [0, 119], sizes = [8, 1], strides = [1, 1]} : vector<8x128xf32> to vector<8x1xf32>
    %c119 = arith.constant 119 : index
    %c0_125 = arith.constant 0 : index
    %724 = vector.load %arg4[%c119, %c0_125] : memref<128x128xf32, #tpu.memory_space<vmem>>, vector<1x128xf32>
    %725 = vector.broadcast %723 : vector<8x1xf32> to vector<8x128xf32>
    %726 = vector.broadcast %724 : vector<1x128xf32> to vector<8x128xf32>
    %727 = arith.addf %725, %726 : vector<8x128xf32>
    %728 = arith.minimumf %722, %727 : vector<8x128xf32>
    %729 = vector.extract_strided_slice %7 {offsets = [0, 120], sizes = [8, 1], strides = [1, 1]} : vector<8x128xf32> to vector<8x1xf32>
    %c120 = arith.constant 120 : index
    %c0_126 = arith.constant 0 : index
    %730 = vector.load %arg4[%c120, %c0_126] : memref<128x128xf32, #tpu.memory_space<vmem>>, vector<1x128xf32>
    %731 = vector.broadcast %729 : vector<8x1xf32> to vector<8x128xf32>
    %732 = vector.broadcast %730 : vector<1x128xf32> to vector<8x128xf32>
    %733 = arith.addf %731, %732 : vector<8x128xf32>
    %734 = arith.minimumf %728, %733 : vector<8x128xf32>
    %735 = vector.extract_strided_slice %7 {offsets = [0, 121], sizes = [8, 1], strides = [1, 1]} : vector<8x128xf32> to vector<8x1xf32>
    %c121 = arith.constant 121 : index
    %c0_127 = arith.constant 0 : index
    %736 = vector.load %arg4[%c121, %c0_127] : memref<128x128xf32, #tpu.memory_space<vmem>>, vector<1x128xf32>
    %737 = vector.broadcast %735 : vector<8x1xf32> to vector<8x128xf32>
    %738 = vector.broadcast %736 : vector<1x128xf32> to vector<8x128xf32>
    %739 = arith.addf %737, %738 : vector<8x128xf32>
    %740 = arith.minimumf %734, %739 : vector<8x128xf32>
    %741 = vector.extract_strided_slice %7 {offsets = [0, 122], sizes = [8, 1], strides = [1, 1]} : vector<8x128xf32> to vector<8x1xf32>
    %c122 = arith.constant 122 : index
    %c0_128 = arith.constant 0 : index
    %742 = vector.load %arg4[%c122, %c0_128] : memref<128x128xf32, #tpu.memory_space<vmem>>, vector<1x128xf32>
    %743 = vector.broadcast %741 : vector<8x1xf32> to vector<8x128xf32>
    %744 = vector.broadcast %742 : vector<1x128xf32> to vector<8x128xf32>
    %745 = arith.addf %743, %744 : vector<8x128xf32>
    %746 = arith.minimumf %740, %745 : vector<8x128xf32>
    %747 = vector.extract_strided_slice %7 {offsets = [0, 123], sizes = [8, 1], strides = [1, 1]} : vector<8x128xf32> to vector<8x1xf32>
    %c123 = arith.constant 123 : index
    %c0_129 = arith.constant 0 : index
    %748 = vector.load %arg4[%c123, %c0_129] : memref<128x128xf32, #tpu.memory_space<vmem>>, vector<1x128xf32>
    %749 = vector.broadcast %747 : vector<8x1xf32> to vector<8x128xf32>
    %750 = vector.broadcast %748 : vector<1x128xf32> to vector<8x128xf32>
    %751 = arith.addf %749, %750 : vector<8x128xf32>
    %752 = arith.minimumf %746, %751 : vector<8x128xf32>
    %753 = vector.extract_strided_slice %7 {offsets = [0, 124], sizes = [8, 1], strides = [1, 1]} : vector<8x128xf32> to vector<8x1xf32>
    %c124 = arith.constant 124 : index
    %c0_130 = arith.constant 0 : index
    %754 = vector.load %arg4[%c124, %c0_130] : memref<128x128xf32, #tpu.memory_space<vmem>>, vector<1x128xf32>
    %755 = vector.broadcast %753 : vector<8x1xf32> to vector<8x128xf32>
    %756 = vector.broadcast %754 : vector<1x128xf32> to vector<8x128xf32>
    %757 = arith.addf %755, %756 : vector<8x128xf32>
    %758 = arith.minimumf %752, %757 : vector<8x128xf32>
    %759 = vector.extract_strided_slice %7 {offsets = [0, 125], sizes = [8, 1], strides = [1, 1]} : vector<8x128xf32> to vector<8x1xf32>
    %c125 = arith.constant 125 : index
    %c0_131 = arith.constant 0 : index
    %760 = vector.load %arg4[%c125, %c0_131] : memref<128x128xf32, #tpu.memory_space<vmem>>, vector<1x128xf32>
    %761 = vector.broadcast %759 : vector<8x1xf32> to vector<8x128xf32>
    %762 = vector.broadcast %760 : vector<1x128xf32> to vector<8x128xf32>
    %763 = arith.addf %761, %762 : vector<8x128xf32>
    %764 = arith.minimumf %758, %763 : vector<8x128xf32>
    %765 = vector.extract_strided_slice %7 {offsets = [0, 126], sizes = [8, 1], strides = [1, 1]} : vector<8x128xf32> to vector<8x1xf32>
    %c126 = arith.constant 126 : index
    %c0_132 = arith.constant 0 : index
    %766 = vector.load %arg4[%c126, %c0_132] : memref<128x128xf32, #tpu.memory_space<vmem>>, vector<1x128xf32>
    %767 = vector.broadcast %765 : vector<8x1xf32> to vector<8x128xf32>
    %768 = vector.broadcast %766 : vector<1x128xf32> to vector<8x128xf32>
    %769 = arith.addf %767, %768 : vector<8x128xf32>
    %770 = arith.minimumf %764, %769 : vector<8x128xf32>
    %771 = vector.extract_strided_slice %7 {offsets = [0, 127], sizes = [8, 1], strides = [1, 1]} : vector<8x128xf32> to vector<8x1xf32>
    %c127 = arith.constant 127 : index
    %c0_133 = arith.constant 0 : index
    %772 = vector.load %arg4[%c127, %c0_133] : memref<128x128xf32, #tpu.memory_space<vmem>>, vector<1x128xf32>
    %773 = vector.broadcast %771 : vector<8x1xf32> to vector<8x128xf32>
    %774 = vector.broadcast %772 : vector<1x128xf32> to vector<8x128xf32>
    %775 = arith.addf %773, %774 : vector<8x128xf32>
    %776 = arith.minimumf %770, %775 : vector<8x128xf32>
    %c0_134 = arith.constant 0 : index
    %c0_135 = arith.constant 0 : index
    %777 = vector.load %arg5[%c0_134, %c0_135] : memref<8x128xf32, #tpu.memory_space<vmem>>, vector<8x128xf32>
    tpu.vector_store %arg5[%c0_134, %c0_135], %776 {strides = array<i32>} : memref<8x128xf32, #tpu.memory_space<vmem>>, vector<8x128xf32>,
    return
  }
  func.func @transform_0(%arg0: i32, %arg1: i32, %arg2: i32) -> (i32, i32) {
    %c0_i32 = arith.constant 0 : i32
    return %arg0, %arg2 : i32, i32
  }
  func.func @transform_1(%arg0: i32, %arg1: i32, %arg2: i32) -> (i32, i32) {
    %c0_i32 = arith.constant 0 : i32
    return %arg2, %arg1 : i32, i32
  }
  func.func @transform_2(%arg0: i32, %arg1: i32, %arg2: i32) -> (i32, i32) {
    %c0_i32 = arith.constant 0 : i32
    return %arg0, %arg1 : i32, i32
  }
}

</mosaic_0001>

<llo_original>
// kernel: tpu_custom_call.1
$region0: #{tpu_custom_call.1}
  #allocation0 [shape = 'u32[]', space=smem, size = 0x4, offset = 0x4, fixed_abs, tag = 'smem constant byte address 0x4 - core index']
  #allocation1 [shape = 'u32[144,128]{1,0:T(1,128)}', space=vmem, size = 0x12000, scoped, tag = 'internal scratch']
  %s0 = inlined_call_operand.hbm [shape: f32[8,128], index: 0, kind: input, shape index: {}]
  %s1 = inlined_call_operand.hbm [shape: f32[128,128], index: 1, kind: input, shape index: {}]
  %s2 = inlined_call_operand.hbm [shape: f32[8,128], index: 2, kind: output, shape index: {}]
  %s3 = sld [smem:[#allocation0]]
  $region30: #{tpu_custom_call.1} parent=0
    _
  %s5 = ssub.s32 1, %s3
  %s6 = scalar_select 0, %s5, %s3
  $region1: #{tpu_custom_call.1} parent=0
    #allocation2 [shape = 'u8[4096]{0}', space=vmem, size = 0x1000, scoped, tag = 'input window, operand 0, single buffered']
    #allocation3 [shape = 's32[1]{0}', space=sflag, size = 0x4, scoped, tag = 'scoped memory for tpu_custom_call.1']
    #allocation4 [shape = 's32[1]{0}', space=sflag, size = 0x4, scoped, tag = 'scoped memory for tpu_custom_call.1']
    #allocation5 [shape = 'u8[65536]{0}', space=vmem, size = 0x10000, scoped, tag = 'input window, operand 1, single buffered']
    #allocation6 [shape = 's32[1]{0}', space=sflag, size = 0x4, scoped, tag = 'scoped memory for tpu_custom_call.1']
    #allocation7 [shape = 'u8[4096]{0}', space=vmem, size = 0x1000, scoped, tag = 'output window, operand 0, single buffered']
    %7 = vsyncpa [#allocation3], 0
    %8 = vsyncpa [#allocation6], 0
    %9 = vsyncpa [#allocation4], 0
    // Predicated region
    $region2: #{tpu_custom_call.1} parent=1 // pred_check
      _
    $region3: #{tpu_custom_call.1} parent=1 // pred_check_branch
      %11 = sbr.rel (0) target = $region5
    $region4: #{tpu_custom_call.1} parent=1 // pred_region
      %s13 = ssub.s32 128, 128
      %14 = vsyncadd [#allocation3], %s13
      %s16 = sshll.u32 [#allocation2], 4
      %s17 = int_to_ptr.vmem [resolvable:$true] %s16
      %19 = dma.hbm_to_vmem [thread:$0]  %s0, 128, %s17, [#allocation3]
    $region5: #{tpu_custom_call.1} parent=1 // pred_fallthru
      _
    // Predicated region
    $region6: #{tpu_custom_call.1} parent=1 // pred_check
      _
    $region7: #{tpu_custom_call.1} parent=1 // pred_check_branch
      %21 = sbr.rel (0) target = $region9
    $region8: #{tpu_custom_call.1} parent=1 // pred_region
      %s23 = ssub.s32 2048, 2048
      %24 = vsyncadd [#allocation6], %s23
      %s25 = sshll.u32 [#allocation5], 4
      %s26 = int_to_ptr.vmem [resolvable:$true] %s25
      %31 = dma.hbm_to_vmem [thread:$0]  %s1, 2048, %s26, [#allocation6], 128, 128, 8
    $region9: #{tpu_custom_call.1} parent=1 // pred_fallthru
      _
    // Predicated region
    $region10: #{tpu_custom_call.1} parent=1 // pred_check
      _
    $region11: #{tpu_custom_call.1} parent=1 // pred_check_branch
      %33 = sbr.rel (0) target = $region13
    $region12: #{tpu_custom_call.1} parent=1 // pred_region
      %34 = dma.done [#allocation3], 128
    $region13: #{tpu_custom_call.1} parent=1 // pred_fallthru
      _
    // Predicated region
    $region14: #{tpu_custom_call.1} parent=1 // pred_check
      _
    $region15: #{tpu_custom_call.1} parent=1 // pred_check_branch
      %36 = sbr.rel (0) target = $region17
    $region16: #{tpu_custom_call.1} parent=1 // pred_region
      %37 = dma.done [#allocation6], 2048
    $region17: #{tpu_custom_call.1} parent=1 // pred_fallthru
      _
    %p38 = scmp.eq.s32.totalorder 0, 0
    // Predicated region
    $region18: #{tpu_custom_call.1} parent=1 // pred_check
      %p39 = pneg %p38
    $region19: #{tpu_custom_call.1} parent=1 // pred_check_branch
      %41 = sbr.rel (%p39) target = $region21
    $region20: #{tpu_custom_call.1} parent=1 // pred_region
      %42 = vst [vmem:[#allocation7] sm:$0xff] inf
    $region21: #{tpu_custom_call.1} parent=1 // pred_fallthru
      _
    %v43 = vld [vmem:[#allocation2] sm:$0xff]
    %vm44 = vcmp.lt.f32.partialorder %v43, 0.0
    %v45 = vsel %vm44, inf, %v43
    %v46 = vld [vmem:[#allocation7] sm:$0xff]
    %v47 = vld [vmem:[#allocation5] sm:$0x1]
    %49 = vset.pattern.permute.xlu0 0
    %50 = vperm.xlu0 %49, %v45
    %v51 = vpop.permute.xlu0 %50
    %v53 = vlaneseq
    %v54 = vshrl.u32 %v53, 7
    %v55 = vsub.s32 0, %v54
    %v56 = vrot.slane %v47, %v55
    %v57 = vadd.f32 %v51, %v56
    %v58 = vmin.f32 %v46, %v57
    %v59 = vld [vmem:[#allocation5 + $0x1] sm:$0x1]
    %60 = vset.pattern.permute.xlu0 1
    %61 = vperm.xlu0 %60, %v45
    %v62 = vpop.permute.xlu0 %61
    %v64 = vlaneseq
    %v65 = vshrl.u32 %v64, 7
    %v66 = vsub.s32 0, %v65
    %v67 = vrot.slane %v59, %v66
    %v68 = vadd.f32 %v62, %v67
    %v69 = vmin.f32 %v58, %v68
    %v70 = vld [vmem:[#allocation5 + $0x2] sm:$0x1]
    %71 = vset.pattern.permute.xlu0 2
    %72 = vperm.xlu0 %71, %v45
    %v73 = vpop.permute.xlu0 %72
    %v75 = vlaneseq
    %v76 = vshrl.u32 %v75, 7
    %v77 = vsub.s32 0, %v76
    %v78 = vrot.slane %v70, %v77
    %v79 = vadd.f32 %v73, %v78
    %v80 = vmin.f32 %v69, %v79
    %v81 = vld [vmem:[#allocation5 + $0x3] sm:$0x1]
    %82 = vset.pattern.permute.xlu0 3
    %83 = vperm.xlu0 %82, %v45
    %v84 = vpop.permute.xlu0 %83
    %v86 = vlaneseq
    %v87 = vshrl.u32 %v86, 7
    %v88 = vsub.s32 0, %v87
    %v89 = vrot.slane %v81, %v88
    %v90 = vadd.f32 %v84, %v89
    %v91 = vmin.f32 %v80, %v90
    %v92 = vld [vmem:[#allocation5 + $0x4] sm:$0x1]
    %93 = vset.pattern.permute.xlu0 4
    %94 = vperm.xlu0 %93, %v45
    %v95 = vpop.permute.xlu0 %94
    %v97 = vlaneseq
    %v98 = vshrl.u32 %v97, 7
    %v99 = vsub.s32 0, %v98
    %v100 = vrot.slane %v92, %v99
    %v101 = vadd.f32 %v95, %v100
    %v102 = vmin.f32 %v91, %v101
    %v103 = vld [vmem:[#allocation5 + $0x5] sm:$0x1]
    %104 = vset.pattern.permute.xlu0 5
    %105 = vperm.xlu0 %104, %v45
    %v106 = vpop.permute.xlu0 %105
    %v108 = vlaneseq
    %v109 = vshrl.u32 %v108, 7
    %v110 = vsub.s32 0, %v109
    %v111 = vrot.slane %v103, %v110
    %v112 = vadd.f32 %v106, %v111
    %v113 = vmin.f32 %v102, %v112
    %v114 = vld [vmem:[#allocation5 + $0x6] sm:$0x1]
    %115 = vset.pattern.permute.xlu0 6
    %116 = vperm.xlu0 %115, %v45
    %v117 = vpop.permute.xlu0 %116
    %v119 = vlaneseq
    %v120 = vshrl.u32 %v119, 7
    %v121 = vsub.s32 0, %v120
    %v122 = vrot.slane %v114, %v121
    %v123 = vadd.f32 %v117, %v122
    %v124 = vmin.f32 %v113, %v123
    %v125 = vld [vmem:[#allocation5 + $0x7] sm:$0x1]
    %126 = vset.pattern.permute.xlu0 7
    %127 = vperm.xlu0 %126, %v45
    %v128 = vpop.permute.xlu0 %127
    %v130 = vlaneseq
    %v131 = vshrl.u32 %v130, 7
    %v132 = vsub.s32 0, %v131
    %v133 = vrot.slane %v125, %v132
    %v134 = vadd.f32 %v128, %v133
    %v135 = vmin.f32 %v124, %v134
    %v136 = vld [vmem:[#allocation5 + $0x8] sm:$0x1]
    %137 = vset.pattern.permute.xlu0 8
    %138 = vperm.xlu0 %137, %v45
    %v139 = vpop.permute.xlu0 %138
    %v141 = vlaneseq
    %v142 = vshrl.u32 %v141, 7
    %v143 = vsub.s32 0, %v142
    %v144 = vrot.slane %v136, %v143
    %v145 = vadd.f32 %v139, %v144
    %v146 = vmin.f32 %v135, %v145
    %v147 = vld [vmem:[#allocation5 + $0x9] sm:$0x1]
    %148 = vset.pattern.permute.xlu0 9
    %149 = vperm.xlu0 %148, %v45
    %v150 = vpop.permute.xlu0 %149
    %v152 = vlaneseq
    %v153 = vshrl.u32 %v152, 7
    %v154 = vsub.s32 0, %v153
    %v155 = vrot.slane %v147, %v154
    %v156 = vadd.f32 %v150, %v155
    %v157 = vmin.f32 %v146, %v156
    %v158 = vld [vmem:[#allocation5 + $0xa] sm:$0x1]
    %159 = vset.pattern.permute.xlu0 10
    %160 = vperm.xlu0 %159, %v45
    %v161 = vpop.permute.xlu0 %160
    %v163 = vlaneseq
    %v164 = vshrl.u32 %v163, 7
    %v165 = vsub.s32 0, %v164
    %v166 = vrot.slane %v158, %v165
    %v167 = vadd.f32 %v161, %v166
    %v168 = vmin.f32 %v157, %v167
    %v169 = vld [vmem:[#allocation5 + $0xb] sm:$0x1]
    %170 = vset.pattern.permute.xlu0 11
    %171 = vperm.xlu0 %170, %v45
    %v172 = vpop.permute.xlu0 %171
    %v174 = vlaneseq
    %v175 = vshrl.u32 %v174, 7
    %v176 = vsub.s32 0, %v175
    %v177 = vrot.slane %v169, %v176
    %v178 = vadd.f32 %v172, %v177
    %v179 = vmin.f32 %v168, %v178
    %v180 = vld [vmem:[#allocation5 + $0xc] sm:$0x1]
    %181 = vset.pattern.permute.xlu0 12
    %182 = vperm.xlu0 %181, %v45
    %v183 = vpop.permute.xlu0 %182
    %v185 = vlaneseq
    %v186 = vshrl.u32 %v185, 7
    %v187 = vsub.s32 0, %v186
    %v188 = vrot.slane %v180, %v187
    %v189 = vadd.f32 %v183, %v188
    %v190 = vmin.f32 %v179, %v189
    %v191 = vld [vmem:[#allocation5 + $0xd] sm:$0x1]
    %192 = vset.pattern.permute.xlu0 13
    %193 = vperm.xlu0 %192, %v45
    %v194 = vpop.permute.xlu0 %193
    %v196 = vlaneseq
    %v197 = vshrl.u32 %v196, 7
    %v198 = vsub.s32 0, %v197
    %v199 = vrot.slane %v191, %v198
    %v200 = vadd.f32 %v194, %v199
    %v201 = vmin.f32 %v190, %v200
    %v202 = vld [vmem:[#allocation5 + $0xe] sm:$0x1]
    %203 = vset.pattern.permute.xlu0 14
    %204 = vperm.xlu0 %203, %v45
    %v205 = vpop.permute.xlu0 %204
    %v207 = vlaneseq
    %v208 = vshrl.u32 %v207, 7
    %v209 = vsub.s32 0, %v208
    %v210 = vrot.slane %v202, %v209
    %v211 = vadd.f32 %v205, %v210
    %v212 = vmin.f32 %v201, %v211
    %v213 = vld [vmem:[#allocation5 + $0xf] sm:$0x1]
    %214 = vset.pattern.permute.xlu0 15
    %215 = vperm.xlu0 %214, %v45
    %v216 = vpop.permute.xlu0 %215
    %v218 = vlaneseq
    %v219 = vshrl.u32 %v218, 7
    %v220 = vsub.s32 0, %v219
    %v221 = vrot.slane %v213, %v220
    %v222 = vadd.f32 %v216, %v221
    %v223 = vmin.f32 %v212, %v222
    %v224 = vld [vmem:[#allocation5 + $0x10] sm:$0x1]
    %225 = vset.pattern.permute.xlu0 16
    %226 = vperm.xlu0 %225, %v45
    %v227 = vpop.permute.xlu0 %226
    %v229 = vlaneseq
    %v230 = vshrl.u32 %v229, 7
    %v231 = vsub.s32 0, %v230
    %v232 = vrot.slane %v224, %v231
    %v233 = vadd.f32 %v227, %v232
    %v234 = vmin.f32 %v223, %v233
    %v235 = vld [vmem:[#allocation5 + $0x11] sm:$0x1]
    %236 = vset.pattern.permute.xlu0 17
    %237 = vperm.xlu0 %236, %v45
    %v238 = vpop.permute.xlu0 %237
    %v240 = vlaneseq
    %v241 = vshrl.u32 %v240, 7
    %v242 = vsub.s32 0, %v241
    %v243 = vrot.slane %v235, %v242
    %v244 = vadd.f32 %v238, %v243
    %v245 = vmin.f32 %v234, %v244
    %v246 = vld [vmem:[#allocation5 + $0x12] sm:$0x1]
    %247 = vset.pattern.permute.xlu0 18
    %248 = vperm.xlu0 %247, %v45
    %v249 = vpop.permute.xlu0 %248
    %v251 = vlaneseq
    %v252 = vshrl.u32 %v251, 7
    %v253 = vsub.s32 0, %v252
    %v254 = vrot.slane %v246, %v253
    %v255 = vadd.f32 %v249, %v254
    %v256 = vmin.f32 %v245, %v255
    %v257 = vld [vmem:[#allocation5 + $0x13] sm:$0x1]
    %258 = vset.pattern.permute.xlu0 19
    %259 = vperm.xlu0 %258, %v45
    %v260 = vpop.permute.xlu0 %259
    %v262 = vlaneseq
    %v263 = vshrl.u32 %v262, 7
    %v264 = vsub.s32 0, %v263
    %v265 = vrot.slane %v257, %v264
    %v266 = vadd.f32 %v260, %v265
    %v267 = vmin.f32 %v256, %v266
    %v268 = vld [vmem:[#allocation5 + $0x14] sm:$0x1]
    %269 = vset.pattern.permute.xlu0 20
    %270 = vperm.xlu0 %269, %v45
    %v271 = vpop.permute.xlu0 %270
    %v273 = vlaneseq
    %v274 = vshrl.u32 %v273, 7
    %v275 = vsub.s32 0, %v274
    %v276 = vrot.slane %v268, %v275
    %v277 = vadd.f32 %v271, %v276
    %v278 = vmin.f32 %v267, %v277
    %v279 = vld [vmem:[#allocation5 + $0x15] sm:$0x1]
    %280 = vset.pattern.permute.xlu0 21
    %281 = vperm.xlu0 %280, %v45
    %v282 = vpop.permute.xlu0 %281
    %v284 = vlaneseq
    %v285 = vshrl.u32 %v284, 7
    %v286 = vsub.s32 0, %v285
    %v287 = vrot.slane %v279, %v286
    %v288 = vadd.f32 %v282, %v287
    %v289 = vmin.f32 %v278, %v288
    %v290 = vld [vmem:[#allocation5 + $0x16] sm:$0x1]
    %291 = vset.pattern.permute.xlu0 22
    %292 = vperm.xlu0 %291, %v45
    %v293 = vpop.permute.xlu0 %292
    %v295 = vlaneseq
    %v296 = vshrl.u32 %v295, 7
    %v297 = vsub.s32 0, %v296
    %v298 = vrot.slane %v290, %v297
    %v299 = vadd.f32 %v293, %v298
    %v300 = vmin.f32 %v289, %v299
    %v301 = vld [vmem:[#allocation5 + $0x17] sm:$0x1]
    %302 = vset.pattern.permute.xlu0 23
    %303 = vperm.xlu0 %302, %v45
    %v304 = vpop.permute.xlu0 %303
    %v306 = vlaneseq
    %v307 = vshrl.u32 %v306, 7
    %v308 = vsub.s32 0, %v307
    %v309 = vrot.slane %v301, %v308
    %v310 = vadd.f32 %v304, %v309
    %v311 = vmin.f32 %v300, %v310
    %v312 = vld [vmem:[#allocation5 + $0x18] sm:$0x1]
    %313 = vset.pattern.permute.xlu0 24
    %314 = vperm.xlu0 %313, %v45
    %v315 = vpop.permute.xlu0 %314
    %v317 = vlaneseq
    %v318 = vshrl.u32 %v317, 7
    %v319 = vsub.s32 0, %v318
    %v320 = vrot.slane %v312, %v319
    %v321 = vadd.f32 %v315, %v320
    %v322 = vmin.f32 %v311, %v321
    %v323 = vld [vmem:[#allocation5 + $0x19] sm:$0x1]
    %324 = vset.pattern.permute.xlu0 25
    %325 = vperm.xlu0 %324, %v45
    %v326 = vpop.permute.xlu0 %325
    %v328 = vlaneseq
    %v329 = vshrl.u32 %v328, 7
    %v330 = vsub.s32 0, %v329
    %v331 = vrot.slane %v323, %v330
    %v332 = vadd.f32 %v326, %v331
    %v333 = vmin.f32 %v322, %v332
    %v334 = vld [vmem:[#allocation5 + $0x1a] sm:$0x1]
    %335 = vset.pattern.permute.xlu0 26
    %336 = vperm.xlu0 %335, %v45
    %v337 = vpop.permute.xlu0 %336
    %v339 = vlaneseq
    %v340 = vshrl.u32 %v339, 7
    %v341 = vsub.s32 0, %v340
    %v342 = vrot.slane %v334, %v341
    %v343 = vadd.f32 %v337, %v342
    %v344 = vmin.f32 %v333, %v343
    %v345 = vld [vmem:[#allocation5 + $0x1b] sm:$0x1]
    %346 = vset.pattern.permute.xlu0 27
    %347 = vperm.xlu0 %346, %v45
    %v348 = vpop.permute.xlu0 %347
    %v350 = vlaneseq
    %v351 = vshrl.u32 %v350, 7
    %v352 = vsub.s32 0, %v351
    %v353 = vrot.slane %v345, %v352
    %v354 = vadd.f32 %v348, %v353
    %v355 = vmin.f32 %v344, %v354
    %v356 = vld [vmem:[#allocation5 + $0x1c] sm:$0x1]
    %357 = vset.pattern.permute.xlu0 28
    %358 = vperm.xlu0 %357, %v45
    %v359 = vpop.permute.xlu0 %358
    %v361 = vlaneseq
    %v362 = vshrl.u32 %v361, 7
    %v363 = vsub.s32 0, %v362
    %v364 = vrot.slane %v356, %v363
    %v365 = vadd.f32 %v359, %v364
    %v366 = vmin.f32 %v355, %v365
    %v367 = vld [vmem:[#allocation5 + $0x1d] sm:$0x1]
    %368 = vset.pattern.permute.xlu0 29
    %369 = vperm.xlu0 %368, %v45
    %v370 = vpop.permute.xlu0 %369
    %v372 = vlaneseq
    %v373 = vshrl.u32 %v372, 7
    %v374 = vsub.s32 0, %v373
    %v375 = vrot.slane %v367, %v374
    %v376 = vadd.f32 %v370, %v375
    %v377 = vmin.f32 %v366, %v376
    %v378 = vld [vmem:[#allocation5 + $0x1e] sm:$0x1]
    %379 = vset.pattern.permute.xlu0 30
    %380 = vperm.xlu0 %379, %v45
    %v381 = vpop.permute.xlu0 %380
    %v383 = vlaneseq
    %v384 = vshrl.u32 %v383, 7
    %v385 = vsub.s32 0, %v384
    %v386 = vrot.slane %v378, %v385
    %v387 = vadd.f32 %v381, %v386
    %v388 = vmin.f32 %v377, %v387
    %v389 = vld [vmem:[#allocation5 + $0x1f] sm:$0x1]
    %390 = vset.pattern.permute.xlu0 31
    %391 = vperm.xlu0 %390, %v45
    %v392 = vpop.permute.xlu0 %391
    %v394 = vlaneseq
    %v395 = vshrl.u32 %v394, 7
    %v396 = vsub.s32 0, %v395
    %v397 = vrot.slane %v389, %v396
    %v398 = vadd.f32 %v392, %v397
    %v399 = vmin.f32 %v388, %v398
    %v400 = vld [vmem:[#allocation5 + $0x20] sm:$0x1]
    %401 = vset.pattern.permute.xlu0 32
    %402 = vperm.xlu0 %401, %v45
    %v403 = vpop.permute.xlu0 %402
    %v405 = vlaneseq
    %v406 = vshrl.u32 %v405, 7
    %v407 = vsub.s32 0, %v406
    %v408 = vrot.slane %v400, %v407
    %v409 = vadd.f32 %v403, %v408
    %v410 = vmin.f32 %v399, %v409
    %v411 = vld [vmem:[#allocation5 + $0x21] sm:$0x1]
    %412 = vset.pattern.permute.xlu0 33
    %413 = vperm.xlu0 %412, %v45
    %v414 = vpop.permute.xlu0 %413
    %v416 = vlaneseq
    %v417 = vshrl.u32 %v416, 7
    %v418 = vsub.s32 0, %v417
    %v419 = vrot.slane %v411, %v418
    %v420 = vadd.f32 %v414, %v419
    %v421 = vmin.f32 %v410, %v420
    %v422 = vld [vmem:[#allocation5 + $0x22] sm:$0x1]
    %423 = vset.pattern.permute.xlu0 34
    %424 = vperm.xlu0 %423, %v45
    %v425 = vpop.permute.xlu0 %424
    %v427 = vlaneseq
    %v428 = vshrl.u32 %v427, 7
    %v429 = vsub.s32 0, %v428
    %v430 = vrot.slane %v422, %v429
    %v431 = vadd.f32 %v425, %v430
    %v432 = vmin.f32 %v421, %v431
    %v433 = vld [vmem:[#allocation5 + $0x23] sm:$0x1]
    %434 = vset.pattern.permute.xlu0 35
    %435 = vperm.xlu0 %434, %v45
    %v436 = vpop.permute.xlu0 %435
    %v438 = vlaneseq
    %v439 = vshrl.u32 %v438, 7
    %v440 = vsub.s32 0, %v439
    %v441 = vrot.slane %v433, %v440
    %v442 = vadd.f32 %v436, %v441
    %v443 = vmin.f32 %v432, %v442
    %v444 = vld [vmem:[#allocation5 + $0x24] sm:$0x1]
    %445 = vset.pattern.permute.xlu0 36
    %446 = vperm.xlu0 %445, %v45
    %v447 = vpop.permute.xlu0 %446
    %v449 = vlaneseq
    %v450 = vshrl.u32 %v449, 7
    %v451 = vsub.s32 0, %v450
    %v452 = vrot.slane %v444, %v451
    %v453 = vadd.f32 %v447, %v452
    %v454 = vmin.f32 %v443, %v453
    %v455 = vld [vmem:[#allocation5 + $0x25] sm:$0x1]
    %456 = vset.pattern.permute.xlu0 37
    %457 = vperm.xlu0 %456, %v45
    %v458 = vpop.permute.xlu0 %457
    %v460 = vlaneseq
    %v461 = vshrl.u32 %v460, 7
    %v462 = vsub.s32 0, %v461
    %v463 = vrot.slane %v455, %v462
    %v464 = vadd.f32 %v458, %v463
    %v465 = vmin.f32 %v454, %v464
    %v466 = vld [vmem:[#allocation5 + $0x26] sm:$0x1]
    %467 = vset.pattern.permute.xlu0 38
    %468 = vperm.xlu0 %467, %v45
    %v469 = vpop.permute.xlu0 %468
    %v471 = vlaneseq
    %v472 = vshrl.u32 %v471, 7
    %v473 = vsub.s32 0, %v472
    %v474 = vrot.slane %v466, %v473
    %v475 = vadd.f32 %v469, %v474
    %v476 = vmin.f32 %v465, %v475
    %v477 = vld [vmem:[#allocation5 + $0x27] sm:$0x1]
    %478 = vset.pattern.permute.xlu0 39
    %479 = vperm.xlu0 %478, %v45
    %v480 = vpop.permute.xlu0 %479
    %v482 = vlaneseq
    %v483 = vshrl.u32 %v482, 7
    %v484 = vsub.s32 0, %v483
    %v485 = vrot.slane %v477, %v484
    %v486 = vadd.f32 %v480, %v485
    %v487 = vmin.f32 %v476, %v486
    %v488 = vld [vmem:[#allocation5 + $0x28] sm:$0x1]
    %489 = vset.pattern.permute.xlu0 40
    %490 = vperm.xlu0 %489, %v45
    %v491 = vpop.permute.xlu0 %490
    %v493 = vlaneseq
    %v494 = vshrl.u32 %v493, 7
    %v495 = vsub.s32 0, %v494
    %v496 = vrot.slane %v488, %v495
    %v497 = vadd.f32 %v491, %v496
    %v498 = vmin.f32 %v487, %v497
    %v499 = vld [vmem:[#allocation5 + $0x29] sm:$0x1]
    %500 = vset.pattern.permute.xlu0 41
    %501 = vperm.xlu0 %500, %v45
    %v502 = vpop.permute.xlu0 %501
    %v504 = vlaneseq
    %v505 = vshrl.u32 %v504, 7
    %v506 = vsub.s32 0, %v505
    %v507 = vrot.slane %v499, %v506
    %v508 = vadd.f32 %v502, %v507
    %v509 = vmin.f32 %v498, %v508
    %v510 = vld [vmem:[#allocation5 + $0x2a] sm:$0x1]
    %511 = vset.pattern.permute.xlu0 42
    %512 = vperm.xlu0 %511, %v45
    %v513 = vpop.permute.xlu0 %512
    %v515 = vlaneseq
    %v516 = vshrl.u32 %v515, 7
    %v517 = vsub.s32 0, %v516
    %v518 = vrot.slane %v510, %v517
    %v519 = vadd.f32 %v513, %v518
    %v520 = vmin.f32 %v509, %v519
    %v521 = vld [vmem:[#allocation5 + $0x2b] sm:$0x1]
    %522 = vset.pattern.permute.xlu0 43
    %523 = vperm.xlu0 %522, %v45
    %v524 = vpop.permute.xlu0 %523
    %v526 = vlaneseq
    %v527 = vshrl.u32 %v526, 7
    %v528 = vsub.s32 0, %v527
    %v529 = vrot.slane %v521, %v528
    %v530 = vadd.f32 %v524, %v529
    %v531 = vmin.f32 %v520, %v530
    %v532 = vld [vmem:[#allocation5 + $0x2c] sm:$0x1]
    %533 = vset.pattern.permute.xlu0 44
    %534 = vperm.xlu0 %533, %v45
    %v535 = vpop.permute.xlu0 %534
    %v537 = vlaneseq
    %v538 = vshrl.u32 %v537, 7
    %v539 = vsub.s32 0, %v538
    %v540 = vrot.slane %v532, %v539
    %v541 = vadd.f32 %v535, %v540
    %v542 = vmin.f32 %v531, %v541
    %v543 = vld [vmem:[#allocation5 + $0x2d] sm:$0x1]
    %544 = vset.pattern.permute.xlu0 45
    %545 = vperm.xlu0 %544, %v45
    %v546 = vpop.permute.xlu0 %545
    %v548 = vlaneseq
    %v549 = vshrl.u32 %v548, 7
    %v550 = vsub.s32 0, %v549
    %v551 = vrot.slane %v543, %v550
    %v552 = vadd.f32 %v546, %v551
    %v553 = vmin.f32 %v542, %v552
    %v554 = vld [vmem:[#allocation5 + $0x2e] sm:$0x1]
    %555 = vset.pattern.permute.xlu0 46
    %556 = vperm.xlu0 %555, %v45
    %v557 = vpop.permute.xlu0 %556
    %v559 = vlaneseq
    %v560 = vshrl.u32 %v559, 7
    %v561 = vsub.s32 0, %v560
    %v562 = vrot.slane %v554, %v561
    %v563 = vadd.f32 %v557, %v562
    %v564 = vmin.f32 %v553, %v563
    %v565 = vld [vmem:[#allocation5 + $0x2f] sm:$0x1]
    %566 = vset.pattern.permute.xlu0 47
    %567 = vperm.xlu0 %566, %v45
    %v568 = vpop.permute.xlu0 %567
    %v570 = vlaneseq
    %v571 = vshrl.u32 %v570, 7
    %v572 = vsub.s32 0, %v571
    %v573 = vrot.slane %v565, %v572
    %v574 = vadd.f32 %v568, %v573
    %v575 = vmin.f32 %v564, %v574
    %v576 = vld [vmem:[#allocation5 + $0x30] sm:$0x1]
    %577 = vset.pattern.permute.xlu0 48
    %578 = vperm.xlu0 %577, %v45
    %v579 = vpop.permute.xlu0 %578
    %v581 = vlaneseq
    %v582 = vshrl.u32 %v581, 7
    %v583 = vsub.s32 0, %v582
    %v584 = vrot.slane %v576, %v583
    %v585 = vadd.f32 %v579, %v584
    %v586 = vmin.f32 %v575, %v585
    %v587 = vld [vmem:[#allocation5 + $0x31] sm:$0x1]
    %588 = vset.pattern.permute.xlu0 49
    %589 = vperm.xlu0 %588, %v45
    %v590 = vpop.permute.xlu0 %589
    %v592 = vlaneseq
    %v593 = vshrl.u32 %v592, 7
    %v594 = vsub.s32 0, %v593
    %v595 = vrot.slane %v587, %v594
    %v596 = vadd.f32 %v590, %v595
    %v597 = vmin.f32 %v586, %v596
    %v598 = vld [vmem:[#allocation5 + $0x32] sm:$0x1]
    %599 = vset.pattern.permute.xlu0 50
    %600 = vperm.xlu0 %599, %v45
    %v601 = vpop.permute.xlu0 %600
    %v603 = vlaneseq
    %v604 = vshrl.u32 %v603, 7
    %v605 = vsub.s32 0, %v604
    %v606 = vrot.slane %v598, %v605
    %v607 = vadd.f32 %v601, %v606
    %v608 = vmin.f32 %v597, %v607
    %v609 = vld [vmem:[#allocation5 + $0x33] sm:$0x1]
    %610 = vset.pattern.permute.xlu0 51
    %611 = vperm.xlu0 %610, %v45
    %v612 = vpop.permute.xlu0 %611
    %v614 = vlaneseq
    %v615 = vshrl.u32 %v614, 7
    %v616 = vsub.s32 0, %v615
    %v617 = vrot.slane %v609, %v616
    %v618 = vadd.f32 %v612, %v617
    %v619 = vmin.f32 %v608, %v618
    %v620 = vld [vmem:[#allocation5 + $0x34] sm:$0x1]
    %621 = vset.pattern.permute.xlu0 52
    %622 = vperm.xlu0 %621, %v45
    %v623 = vpop.permute.xlu0 %622
    %v625 = vlaneseq
    %v626 = vshrl.u32 %v625, 7
    %v627 = vsub.s32 0, %v626
    %v628 = vrot.slane %v620, %v627
    %v629 = vadd.f32 %v623, %v628
    %v630 = vmin.f32 %v619, %v629
    %v631 = vld [vmem:[#allocation5 + $0x35] sm:$0x1]
    %632 = vset.pattern.permute.xlu0 53
    %633 = vperm.xlu0 %632, %v45
    %v634 = vpop.permute.xlu0 %633
    %v636 = vlaneseq
    %v637 = vshrl.u32 %v636, 7
    %v638 = vsub.s32 0, %v637
    %v639 = vrot.slane %v631, %v638
    %v640 = vadd.f32 %v634, %v639
    %v641 = vmin.f32 %v630, %v640
    %v642 = vld [vmem:[#allocation5 + $0x36] sm:$0x1]
    %643 = vset.pattern.permute.xlu0 54
    %644 = vperm.xlu0 %643, %v45
    %v645 = vpop.permute.xlu0 %644
    %v647 = vlaneseq
    %v648 = vshrl.u32 %v647, 7
    %v649 = vsub.s32 0, %v648
    %v650 = vrot.slane %v642, %v649
    %v651 = vadd.f32 %v645, %v650
    %v652 = vmin.f32 %v641, %v651
    %v653 = vld [vmem:[#allocation5 + $0x37] sm:$0x1]
    %654 = vset.pattern.permute.xlu0 55
    %655 = vperm.xlu0 %654, %v45
    %v656 = vpop.permute.xlu0 %655
    %v658 = vlaneseq
    %v659 = vshrl.u32 %v658, 7
    %v660 = vsub.s32 0, %v659
    %v661 = vrot.slane %v653, %v660
    %v662 = vadd.f32 %v656, %v661
    %v663 = vmin.f32 %v652, %v662
    %v664 = vld [vmem:[#allocation5 + $0x38] sm:$0x1]
    %665 = vset.pattern.permute.xlu0 56
    %666 = vperm.xlu0 %665, %v45
    %v667 = vpop.permute.xlu0 %666
    %v669 = vlaneseq
    %v670 = vshrl.u32 %v669, 7
    %v671 = vsub.s32 0, %v670
    %v672 = vrot.slane %v664, %v671
    %v673 = vadd.f32 %v667, %v672
    %v674 = vmin.f32 %v663, %v673
    %v675 = vld [vmem:[#allocation5 + $0x39] sm:$0x1]
    %676 = vset.pattern.permute.xlu0 57
    %677 = vperm.xlu0 %676, %v45
    %v678 = vpop.permute.xlu0 %677
    %v680 = vlaneseq
    %v681 = vshrl.u32 %v680, 7
    %v682 = vsub.s32 0, %v681
    %v683 = vrot.slane %v675, %v682
    %v684 = vadd.f32 %v678, %v683
    %v685 = vmin.f32 %v674, %v684
    %v686 = vld [vmem:[#allocation5 + $0x3a] sm:$0x1]
    %687 = vset.pattern.permute.xlu0 58
    %688 = vperm.xlu0 %687, %v45
    %v689 = vpop.permute.xlu0 %688
    %v691 = vlaneseq
    %v692 = vshrl.u32 %v691, 7
    %v693 = vsub.s32 0, %v692
    %v694 = vrot.slane %v686, %v693
    %v695 = vadd.f32 %v689, %v694
    %v696 = vmin.f32 %v685, %v695
    %v697 = vld [vmem:[#allocation5 + $0x3b] sm:$0x1]
    %698 = vset.pattern.permute.xlu0 59
    %699 = vperm.xlu0 %698, %v45
    %v700 = vpop.permute.xlu0 %699
    %v702 = vlaneseq
    %v703 = vshrl.u32 %v702, 7
    %v704 = vsub.s32 0, %v703
    %v705 = vrot.slane %v697, %v704
    %v706 = vadd.f32 %v700, %v705
    %v707 = vmin.f32 %v696, %v706
    %v708 = vld [vmem:[#allocation5 + $0x3c] sm:$0x1]
    %709 = vset.pattern.permute.xlu0 60
    %710 = vperm.xlu0 %709, %v45
    %v711 = vpop.permute.xlu0 %710
    %v713 = vlaneseq
    %v714 = vshrl.u32 %v713, 7
    %v715 = vsub.s32 0, %v714
    %v716 = vrot.slane %v708, %v715
    %v717 = vadd.f32 %v711, %v716
    %v718 = vmin.f32 %v707, %v717
    %v719 = vld [vmem:[#allocation5 + $0x3d] sm:$0x1]
    %720 = vset.pattern.permute.xlu0 61
    %721 = vperm.xlu0 %720, %v45
    %v722 = vpop.permute.xlu0 %721
    %v724 = vlaneseq
    %v725 = vshrl.u32 %v724, 7
    %v726 = vsub.s32 0, %v725
    %v727 = vrot.slane %v719, %v726
    %v728 = vadd.f32 %v722, %v727
    %v729 = vmin.f32 %v718, %v728
    %v730 = vld [vmem:[#allocation5 + $0x3e] sm:$0x1]
    %731 = vset.pattern.permute.xlu0 62
    %732 = vperm.xlu0 %731, %v45
    %v733 = vpop.permute.xlu0 %732
    %v735 = vlaneseq
    %v736 = vshrl.u32 %v735, 7
    %v737 = vsub.s32 0, %v736
    %v738 = vrot.slane %v730, %v737
    %v739 = vadd.f32 %v733, %v738
    %v740 = vmin.f32 %v729, %v739
    %v741 = vld [vmem:[#allocation5 + $0x3f] sm:$0x1]
    %742 = vset.pattern.permute.xlu0 63
    %743 = vperm.xlu0 %742, %v45
    %v744 = vpop.permute.xlu0 %743
    %v746 = vlaneseq
    %v747 = vshrl.u32 %v746, 7
    %v748 = vsub.s32 0, %v747
    %v749 = vrot.slane %v741, %v748
    %v750 = vadd.f32 %v744, %v749
    %v751 = vmin.f32 %v740, %v750
    %v752 = vld [vmem:[#allocation5 + $0x40] sm:$0x1]
    %753 = vset.pattern.permute.xlu0 64
    %754 = vperm.xlu0 %753, %v45
    %v755 = vpop.permute.xlu0 %754
    %v757 = vlaneseq
    %v758 = vshrl.u32 %v757, 7
    %v759 = vsub.s32 0, %v758
    %v760 = vrot.slane %v752, %v759
    %v761 = vadd.f32 %v755, %v760
    %v762 = vmin.f32 %v751, %v761
    %v763 = vld [vmem:[#allocation5 + $0x41] sm:$0x1]
    %764 = vset.pattern.permute.xlu0 65
    %765 = vperm.xlu0 %764, %v45
    %v766 = vpop.permute.xlu0 %765
    %v768 = vlaneseq
    %v769 = vshrl.u32 %v768, 7
    %v770 = vsub.s32 0, %v769
    %v771 = vrot.slane %v763, %v770
    %v772 = vadd.f32 %v766, %v771
    %v773 = vmin.f32 %v762, %v772
    %v774 = vld [vmem:[#allocation5 + $0x42] sm:$0x1]
    %775 = vset.pattern.permute.xlu0 66
    %776 = vperm.xlu0 %775, %v45
    %v777 = vpop.permute.xlu0 %776
    %v779 = vlaneseq
    %v780 = vshrl.u32 %v779, 7
    %v781 = vsub.s32 0, %v780
    %v782 = vrot.slane %v774, %v781
    %v783 = vadd.f32 %v777, %v782
    %v784 = vmin.f32 %v773, %v783
    %v785 = vld [vmem:[#allocation5 + $0x43] sm:$0x1]
    %786 = vset.pattern.permute.xlu0 67
    %787 = vperm.xlu0 %786, %v45
    %v788 = vpop.permute.xlu0 %787
    %v790 = vlaneseq
    %v791 = vshrl.u32 %v790, 7
    %v792 = vsub.s32 0, %v791
    %v793 = vrot.slane %v785, %v792
    %v794 = vadd.f32 %v788, %v793
    %v795 = vmin.f32 %v784, %v794
    %v796 = vld [vmem:[#allocation5 + $0x44] sm:$0x1]
    %797 = vset.pattern.permute.xlu0 68
    %798 = vperm.xlu0 %797, %v45
    %v799 = vpop.permute.xlu0 %798
    %v801 = vlaneseq
    %v802 = vshrl.u32 %v801, 7
    %v803 = vsub.s32 0, %v802
    %v804 = vrot.slane %v796, %v803
    %v805 = vadd.f32 %v799, %v804
    %v806 = vmin.f32 %v795, %v805
    %v807 = vld [vmem:[#allocation5 + $0x45] sm:$0x1]
    %808 = vset.pattern.permute.xlu0 69
    %809 = vperm.xlu0 %808, %v45
    %v810 = vpop.permute.xlu0 %809
    %v812 = vlaneseq
    %v813 = vshrl.u32 %v812, 7
    %v814 = vsub.s32 0, %v813
    %v815 = vrot.slane %v807, %v814
    %v816 = vadd.f32 %v810, %v815
    %v817 = vmin.f32 %v806, %v816
    %v818 = vld [vmem:[#allocation5 + $0x46] sm:$0x1]
    %819 = vset.pattern.permute.xlu0 70
    %820 = vperm.xlu0 %819, %v45
    %v821 = vpop.permute.xlu0 %820
    %v823 = vlaneseq
    %v824 = vshrl.u32 %v823, 7
    %v825 = vsub.s32 0, %v824
    %v826 = vrot.slane %v818, %v825
    %v827 = vadd.f32 %v821, %v826
    %v828 = vmin.f32 %v817, %v827
    %v829 = vld [vmem:[#allocation5 + $0x47] sm:$0x1]
    %830 = vset.pattern.permute.xlu0 71
    %831 = vperm.xlu0 %830, %v45
    %v832 = vpop.permute.xlu0 %831
    %v834 = vlaneseq
    %v835 = vshrl.u32 %v834, 7
    %v836 = vsub.s32 0, %v835
    %v837 = vrot.slane %v829, %v836
    %v838 = vadd.f32 %v832, %v837
    %v839 = vmin.f32 %v828, %v838
    %v840 = vld [vmem:[#allocation5 + $0x48] sm:$0x1]
    %841 = vset.pattern.permute.xlu0 72
    %842 = vperm.xlu0 %841, %v45
    %v843 = vpop.permute.xlu0 %842
    %v845 = vlaneseq
    %v846 = vshrl.u32 %v845, 7
    %v847 = vsub.s32 0, %v846
    %v848 = vrot.slane %v840, %v847
    %v849 = vadd.f32 %v843, %v848
    %v850 = vmin.f32 %v839, %v849
    %v851 = vld [vmem:[#allocation5 + $0x49] sm:$0x1]
    %852 = vset.pattern.permute.xlu0 73
    %853 = vperm.xlu0 %852, %v45
    %v854 = vpop.permute.xlu0 %853
    %v856 = vlaneseq
    %v857 = vshrl.u32 %v856, 7
    %v858 = vsub.s32 0, %v857
    %v859 = vrot.slane %v851, %v858
    %v860 = vadd.f32 %v854, %v859
    %v861 = vmin.f32 %v850, %v860
    %v862 = vld [vmem:[#allocation5 + $0x4a] sm:$0x1]
    %863 = vset.pattern.permute.xlu0 74
    %864 = vperm.xlu0 %863, %v45
    %v865 = vpop.permute.xlu0 %864
    %v867 = vlaneseq
    %v868 = vshrl.u32 %v867, 7
    %v869 = vsub.s32 0, %v868
    %v870 = vrot.slane %v862, %v869
    %v871 = vadd.f32 %v865, %v870
    %v872 = vmin.f32 %v861, %v871
    %v873 = vld [vmem:[#allocation5 + $0x4b] sm:$0x1]
    %874 = vset.pattern.permute.xlu0 75
    %875 = vperm.xlu0 %874, %v45
    %v876 = vpop.permute.xlu0 %875
    %v878 = vlaneseq
    %v879 = vshrl.u32 %v878, 7
    %v880 = vsub.s32 0, %v879
    %v881 = vrot.slane %v873, %v880
    %v882 = vadd.f32 %v876, %v881
    %v883 = vmin.f32 %v872, %v882
    %v884 = vld [vmem:[#allocation5 + $0x4c] sm:$0x1]
    %885 = vset.pattern.permute.xlu0 76
    %886 = vperm.xlu0 %885, %v45
    %v887 = vpop.permute.xlu0 %886
    %v889 = vlaneseq
    %v890 = vshrl.u32 %v889, 7
    %v891 = vsub.s32 0, %v890
    %v892 = vrot.slane %v884, %v891
    %v893 = vadd.f32 %v887, %v892
    %v894 = vmin.f32 %v883, %v893
    %v895 = vld [vmem:[#allocation5 + $0x4d] sm:$0x1]
    %896 = vset.pattern.permute.xlu0 77
    %897 = vperm.xlu0 %896, %v45
    %v898 = vpop.permute.xlu0 %897
    %v900 = vlaneseq
    %v901 = vshrl.u32 %v900, 7
    %v902 = vsub.s32 0, %v901
    %v903 = vrot.slane %v895, %v902
    %v904 = vadd.f32 %v898, %v903
    %v905 = vmin.f32 %v894, %v904
    %v906 = vld [vmem:[#allocation5 + $0x4e] sm:$0x1]
    %907 = vset.pattern.permute.xlu0 78
    %908 = vperm.xlu0 %907, %v45
    %v909 = vpop.permute.xlu0 %908
    %v911 = vlaneseq
    %v912 = vshrl.u32 %v911, 7
    %v913 = vsub.s32 0, %v912
    %v914 = vrot.slane %v906, %v913
    %v915 = vadd.f32 %v909, %v914
    %v916 = vmin.f32 %v905, %v915
    %v917 = vld [vmem:[#allocation5 + $0x4f] sm:$0x1]
    %918 = vset.pattern.permute.xlu0 79
    %919 = vperm.xlu0 %918, %v45
    %v920 = vpop.permute.xlu0 %919
    %v922 = vlaneseq
    %v923 = vshrl.u32 %v922, 7
    %v924 = vsub.s32 0, %v923
    %v925 = vrot.slane %v917, %v924
    %v926 = vadd.f32 %v920, %v925
    %v927 = vmin.f32 %v916, %v926
    %v928 = vld [vmem:[#allocation5 + $0x50] sm:$0x1]
    %929 = vset.pattern.permute.xlu0 80
    %930 = vperm.xlu0 %929, %v45
    %v931 = vpop.permute.xlu0 %930
    %v933 = vlaneseq
    %v934 = vshrl.u32 %v933, 7
    %v935 = vsub.s32 0, %v934
    %v936 = vrot.slane %v928, %v935
    %v937 = vadd.f32 %v931, %v936
    %v938 = vmin.f32 %v927, %v937
    %v939 = vld [vmem:[#allocation5 + $0x51] sm:$0x1]
    %940 = vset.pattern.permute.xlu0 81
    %941 = vperm.xlu0 %940, %v45
    %v942 = vpop.permute.xlu0 %941
    %v944 = vlaneseq
    %v945 = vshrl.u32 %v944, 7
    %v946 = vsub.s32 0, %v945
    %v947 = vrot.slane %v939, %v946
    %v948 = vadd.f32 %v942, %v947
    %v949 = vmin.f32 %v938, %v948
    %v950 = vld [vmem:[#allocation5 + $0x52] sm:$0x1]
    %951 = vset.pattern.permute.xlu0 82
    %952 = vperm.xlu0 %951, %v45
    %v953 = vpop.permute.xlu0 %952
    %v955 = vlaneseq
    %v956 = vshrl.u32 %v955, 7
    %v957 = vsub.s32 0, %v956
    %v958 = vrot.slane %v950, %v957
    %v959 = vadd.f32 %v953, %v958
    %v960 = vmin.f32 %v949, %v959
    %v961 = vld [vmem:[#allocation5 + $0x53] sm:$0x1]
    %962 = vset.pattern.permute.xlu0 83
    %963 = vperm.xlu0 %962, %v45
    %v964 = vpop.permute.xlu0 %963
    %v966 = vlaneseq
    %v967 = vshrl.u32 %v966, 7
    %v968 = vsub.s32 0, %v967
    %v969 = vrot.slane %v961, %v968
    %v970 = vadd.f32 %v964, %v969
    %v971 = vmin.f32 %v960, %v970
    %v972 = vld [vmem:[#allocation5 + $0x54] sm:$0x1]
    %973 = vset.pattern.permute.xlu0 84
    %974 = vperm.xlu0 %973, %v45
    %v975 = vpop.permute.xlu0 %974
    %v977 = vlaneseq
    %v978 = vshrl.u32 %v977, 7
    %v979 = vsub.s32 0, %v978
    %v980 = vrot.slane %v972, %v979
    %v981 = vadd.f32 %v975, %v980
    %v982 = vmin.f32 %v971, %v981
    %v983 = vld [vmem:[#allocation5 + $0x55] sm:$0x1]
    %984 = vset.pattern.permute.xlu0 85
    %985 = vperm.xlu0 %984, %v45
    %v986 = vpop.permute.xlu0 %985
    %v988 = vlaneseq
    %v989 = vshrl.u32 %v988, 7
    %v990 = vsub.s32 0, %v989
    %v991 = vrot.slane %v983, %v990
    %v992 = vadd.f32 %v986, %v991
    %v993 = vmin.f32 %v982, %v992
    %v994 = vld [vmem:[#allocation5 + $0x56] sm:$0x1]
    %995 = vset.pattern.permute.xlu0 86
    %996 = vperm.xlu0 %995, %v45
    %v997 = vpop.permute.xlu0 %996
    %v999 = vlaneseq
    %v1000 = vshrl.u32 %v999, 7
    %v1001 = vsub.s32 0, %v1000
    %v1002 = vrot.slane %v994, %v1001
    %v1003 = vadd.f32 %v997, %v1002
    %v1004 = vmin.f32 %v993, %v1003
    %v1005 = vld [vmem:[#allocation5 + $0x57] sm:$0x1]
    %1006 = vset.pattern.permute.xlu0 87
    %1007 = vperm.xlu0 %1006, %v45
    %v1008 = vpop.permute.xlu0 %1007
    %v1010 = vlaneseq
    %v1011 = vshrl.u32 %v1010, 7
    %v1012 = vsub.s32 0, %v1011
    %v1013 = vrot.slane %v1005, %v1012
    %v1014 = vadd.f32 %v1008, %v1013
    %v1015 = vmin.f32 %v1004, %v1014
    %v1016 = vld [vmem:[#allocation5 + $0x58] sm:$0x1]
    %1017 = vset.pattern.permute.xlu0 88
    %1018 = vperm.xlu0 %1017, %v45
    %v1019 = vpop.permute.xlu0 %1018
    %v1021 = vlaneseq
    %v1022 = vshrl.u32 %v1021, 7
    %v1023 = vsub.s32 0, %v1022
    %v1024 = vrot.slane %v1016, %v1023
    %v1025 = vadd.f32 %v1019, %v1024
    %v1026 = vmin.f32 %v1015, %v1025
    %v1027 = vld [vmem:[#allocation5 + $0x59] sm:$0x1]
    %1028 = vset.pattern.permute.xlu0 89
    %1029 = vperm.xlu0 %1028, %v45
    %v1030 = vpop.permute.xlu0 %1029
    %v1032 = vlaneseq
    %v1033 = vshrl.u32 %v1032, 7
    %v1034 = vsub.s32 0, %v1033
    %v1035 = vrot.slane %v1027, %v1034
    %v1036 = vadd.f32 %v1030, %v1035
    %v1037 = vmin.f32 %v1026, %v1036
    %v1038 = vld [vmem:[#allocation5 + $0x5a] sm:$0x1]
    %1039 = vset.pattern.permute.xlu0 90
    %1040 = vperm.xlu0 %1039, %v45
    %v1041 = vpop.permute.xlu0 %1040
    %v1043 = vlaneseq
    %v1044 = vshrl.u32 %v1043, 7
    %v1045 = vsub.s32 0, %v1044
    %v1046 = vrot.slane %v1038, %v1045
    %v1047 = vadd.f32 %v1041, %v1046
    %v1048 = vmin.f32 %v1037, %v1047
    %v1049 = vld [vmem:[#allocation5 + $0x5b] sm:$0x1]
    %1050 = vset.pattern.permute.xlu0 91
    %1051 = vperm.xlu0 %1050, %v45
    %v1052 = vpop.permute.xlu0 %1051
    %v1054 = vlaneseq
    %v1055 = vshrl.u32 %v1054, 7
    %v1056 = vsub.s32 0, %v1055
    %v1057 = vrot.slane %v1049, %v1056
    %v1058 = vadd.f32 %v1052, %v1057
    %v1059 = vmin.f32 %v1048, %v1058
    %v1060 = vld [vmem:[#allocation5 + $0x5c] sm:$0x1]
    %1061 = vset.pattern.permute.xlu0 92
    %1062 = vperm.xlu0 %1061, %v45
    %v1063 = vpop.permute.xlu0 %1062
    %v1065 = vlaneseq
    %v1066 = vshrl.u32 %v1065, 7
    %v1067 = vsub.s32 0, %v1066
    %v1068 = vrot.slane %v1060, %v1067
    %v1069 = vadd.f32 %v1063, %v1068
    %v1070 = vmin.f32 %v1059, %v1069
    %v1071 = vld [vmem:[#allocation5 + $0x5d] sm:$0x1]
    %1072 = vset.pattern.permute.xlu0 93
    %1073 = vperm.xlu0 %1072, %v45
    %v1074 = vpop.permute.xlu0 %1073
    %v1076 = vlaneseq
    %v1077 = vshrl.u32 %v1076, 7
    %v1078 = vsub.s32 0, %v1077
    %v1079 = vrot.slane %v1071, %v1078
    %v1080 = vadd.f32 %v1074, %v1079
    %v1081 = vmin.f32 %v1070, %v1080
    %v1082 = vld [vmem:[#allocation5 + $0x5e] sm:$0x1]
    %1083 = vset.pattern.permute.xlu0 94
    %1084 = vperm.xlu0 %1083, %v45
    %v1085 = vpop.permute.xlu0 %1084
    %v1087 = vlaneseq
    %v1088 = vshrl.u32 %v1087, 7
    %v1089 = vsub.s32 0, %v1088
    %v1090 = vrot.slane %v1082, %v1089
    %v1091 = vadd.f32 %v1085, %v1090
    %v1092 = vmin.f32 %v1081, %v1091
    %v1093 = vld [vmem:[#allocation5 + $0x5f] sm:$0x1]
    %1094 = vset.pattern.permute.xlu0 95
    %1095 = vperm.xlu0 %1094, %v45
    %v1096 = vpop.permute.xlu0 %1095
    %v1098 = vlaneseq
    %v1099 = vshrl.u32 %v1098, 7
    %v1100 = vsub.s32 0, %v1099
    %v1101 = vrot.slane %v1093, %v1100
    %v1102 = vadd.f32 %v1096, %v1101
    %v1103 = vmin.f32 %v1092, %v1102
    %v1104 = vld [vmem:[#allocation5 + $0x60] sm:$0x1]
    %1105 = vset.pattern.permute.xlu0 96
    %1106 = vperm.xlu0 %1105, %v45
    %v1107 = vpop.permute.xlu0 %1106
    %v1109 = vlaneseq
    %v1110 = vshrl.u32 %v1109, 7
    %v1111 = vsub.s32 0, %v1110
    %v1112 = vrot.slane %v1104, %v1111
    %v1113 = vadd.f32 %v1107, %v1112
    %v1114 = vmin.f32 %v1103, %v1113
    %v1115 = vld [vmem:[#allocation5 + $0x61] sm:$0x1]
    %1116 = vset.pattern.permute.xlu0 97
    %1117 = vperm.xlu0 %1116, %v45
    %v1118 = vpop.permute.xlu0 %1117
    %v1120 = vlaneseq
    %v1121 = vshrl.u32 %v1120, 7
    %v1122 = vsub.s32 0, %v1121
    %v1123 = vrot.slane %v1115, %v1122
    %v1124 = vadd.f32 %v1118, %v1123
    %v1125 = vmin.f32 %v1114, %v1124
    %v1126 = vld [vmem:[#allocation5 + $0x62] sm:$0x1]
    %1127 = vset.pattern.permute.xlu0 98
    %1128 = vperm.xlu0 %1127, %v45
    %v1129 = vpop.permute.xlu0 %1128
    %v1131 = vlaneseq
    %v1132 = vshrl.u32 %v1131, 7
    %v1133 = vsub.s32 0, %v1132
    %v1134 = vrot.slane %v1126, %v1133
    %v1135 = vadd.f32 %v1129, %v1134
    %v1136 = vmin.f32 %v1125, %v1135
    %v1137 = vld [vmem:[#allocation5 + $0x63] sm:$0x1]
    %1138 = vset.pattern.permute.xlu0 99
    %1139 = vperm.xlu0 %1138, %v45
    %v1140 = vpop.permute.xlu0 %1139
    %v1142 = vlaneseq
    %v1143 = vshrl.u32 %v1142, 7
    %v1144 = vsub.s32 0, %v1143
    %v1145 = vrot.slane %v1137, %v1144
    %v1146 = vadd.f32 %v1140, %v1145
    %v1147 = vmin.f32 %v1136, %v1146
    %v1148 = vld [vmem:[#allocation5 + $0x64] sm:$0x1]
    %1149 = vset.pattern.permute.xlu0 100
    %1150 = vperm.xlu0 %1149, %v45
    %v1151 = vpop.permute.xlu0 %1150
    %v1153 = vlaneseq
    %v1154 = vshrl.u32 %v1153, 7
    %v1155 = vsub.s32 0, %v1154
    %v1156 = vrot.slane %v1148, %v1155
    %v1157 = vadd.f32 %v1151, %v1156
    %v1158 = vmin.f32 %v1147, %v1157
    %v1159 = vld [vmem:[#allocation5 + $0x65] sm:$0x1]
    %1160 = vset.pattern.permute.xlu0 101
    %1161 = vperm.xlu0 %1160, %v45
    %v1162 = vpop.permute.xlu0 %1161
    %v1164 = vlaneseq
    %v1165 = vshrl.u32 %v1164, 7
    %v1166 = vsub.s32 0, %v1165
    %v1167 = vrot.slane %v1159, %v1166
    %v1168 = vadd.f32 %v1162, %v1167
    %v1169 = vmin.f32 %v1158, %v1168
    %v1170 = vld [vmem:[#allocation5 + $0x66] sm:$0x1]
    %1171 = vset.pattern.permute.xlu0 102
    %1172 = vperm.xlu0 %1171, %v45
    %v1173 = vpop.permute.xlu0 %1172
    %v1175 = vlaneseq
    %v1176 = vshrl.u32 %v1175, 7
    %v1177 = vsub.s32 0, %v1176
    %v1178 = vrot.slane %v1170, %v1177
    %v1179 = vadd.f32 %v1173, %v1178
    %v1180 = vmin.f32 %v1169, %v1179
    %v1181 = vld [vmem:[#allocation5 + $0x67] sm:$0x1]
    %1182 = vset.pattern.permute.xlu0 103
    %1183 = vperm.xlu0 %1182, %v45
    %v1184 = vpop.permute.xlu0 %1183
    %v1186 = vlaneseq
    %v1187 = vshrl.u32 %v1186, 7
    %v1188 = vsub.s32 0, %v1187
    %v1189 = vrot.slane %v1181, %v1188
    %v1190 = vadd.f32 %v1184, %v1189
    %v1191 = vmin.f32 %v1180, %v1190
    %v1192 = vld [vmem:[#allocation5 + $0x68] sm:$0x1]
    %1193 = vset.pattern.permute.xlu0 104
    %1194 = vperm.xlu0 %1193, %v45
    %v1195 = vpop.permute.xlu0 %1194
    %v1197 = vlaneseq
    %v1198 = vshrl.u32 %v1197, 7
    %v1199 = vsub.s32 0, %v1198
    %v1200 = vrot.slane %v1192, %v1199
    %v1201 = vadd.f32 %v1195, %v1200
    %v1202 = vmin.f32 %v1191, %v1201
    %v1203 = vld [vmem:[#allocation5 + $0x69] sm:$0x1]
    %1204 = vset.pattern.permute.xlu0 105
    %1205 = vperm.xlu0 %1204, %v45
    %v1206 = vpop.permute.xlu0 %1205
    %v1208 = vlaneseq
    %v1209 = vshrl.u32 %v1208, 7
    %v1210 = vsub.s32 0, %v1209
    %v1211 = vrot.slane %v1203, %v1210
    %v1212 = vadd.f32 %v1206, %v1211
    %v1213 = vmin.f32 %v1202, %v1212
    %v1214 = vld [vmem:[#allocation5 + $0x6a] sm:$0x1]
    %1215 = vset.pattern.permute.xlu0 106
    %1216 = vperm.xlu0 %1215, %v45
    %v1217 = vpop.permute.xlu0 %1216
    %v1219 = vlaneseq
    %v1220 = vshrl.u32 %v1219, 7
    %v1221 = vsub.s32 0, %v1220
    %v1222 = vrot.slane %v1214, %v1221
    %v1223 = vadd.f32 %v1217, %v1222
    %v1224 = vmin.f32 %v1213, %v1223
    %v1225 = vld [vmem:[#allocation5 + $0x6b] sm:$0x1]
    %1226 = vset.pattern.permute.xlu0 107
    %1227 = vperm.xlu0 %1226, %v45
    %v1228 = vpop.permute.xlu0 %1227
    %v1230 = vlaneseq
    %v1231 = vshrl.u32 %v1230, 7
    %v1232 = vsub.s32 0, %v1231
    %v1233 = vrot.slane %v1225, %v1232
    %v1234 = vadd.f32 %v1228, %v1233
    %v1235 = vmin.f32 %v1224, %v1234
    %v1236 = vld [vmem:[#allocation5 + $0x6c] sm:$0x1]
    %1237 = vset.pattern.permute.xlu0 108
    %1238 = vperm.xlu0 %1237, %v45
    %v1239 = vpop.permute.xlu0 %1238
    %v1241 = vlaneseq
    %v1242 = vshrl.u32 %v1241, 7
    %v1243 = vsub.s32 0, %v1242
    %v1244 = vrot.slane %v1236, %v1243
    %v1245 = vadd.f32 %v1239, %v1244
    %v1246 = vmin.f32 %v1235, %v1245
    %v1247 = vld [vmem:[#allocation5 + $0x6d] sm:$0x1]
    %1248 = vset.pattern.permute.xlu0 109
    %1249 = vperm.xlu0 %1248, %v45
    %v1250 = vpop.permute.xlu0 %1249
    %v1252 = vlaneseq
    %v1253 = vshrl.u32 %v1252, 7
    %v1254 = vsub.s32 0, %v1253
    %v1255 = vrot.slane %v1247, %v1254
    %v1256 = vadd.f32 %v1250, %v1255
    %v1257 = vmin.f32 %v1246, %v1256
    %v1258 = vld [vmem:[#allocation5 + $0x6e] sm:$0x1]
    %1259 = vset.pattern.permute.xlu0 110
    %1260 = vperm.xlu0 %1259, %v45
    %v1261 = vpop.permute.xlu0 %1260
    %v1263 = vlaneseq
    %v1264 = vshrl.u32 %v1263, 7
    %v1265 = vsub.s32 0, %v1264
    %v1266 = vrot.slane %v1258, %v1265
    %v1267 = vadd.f32 %v1261, %v1266
    %v1268 = vmin.f32 %v1257, %v1267
    %v1269 = vld [vmem:[#allocation5 + $0x6f] sm:$0x1]
    %1270 = vset.pattern.permute.xlu0 111
    %1271 = vperm.xlu0 %1270, %v45
    %v1272 = vpop.permute.xlu0 %1271
    %v1274 = vlaneseq
    %v1275 = vshrl.u32 %v1274, 7
    %v1276 = vsub.s32 0, %v1275
    %v1277 = vrot.slane %v1269, %v1276
    %v1278 = vadd.f32 %v1272, %v1277
    %v1279 = vmin.f32 %v1268, %v1278
    %v1280 = vld [vmem:[#allocation5 + $0x70] sm:$0x1]
    %1281 = vset.pattern.permute.xlu0 112
    %1282 = vperm.xlu0 %1281, %v45
    %v1283 = vpop.permute.xlu0 %1282
    %v1285 = vlaneseq
    %v1286 = vshrl.u32 %v1285, 7
    %v1287 = vsub.s32 0, %v1286
    %v1288 = vrot.slane %v1280, %v1287
    %v1289 = vadd.f32 %v1283, %v1288
    %v1290 = vmin.f32 %v1279, %v1289
    %v1291 = vld [vmem:[#allocation5 + $0x71] sm:$0x1]
    %1292 = vset.pattern.permute.xlu0 113
    %1293 = vperm.xlu0 %1292, %v45
    %v1294 = vpop.permute.xlu0 %1293
    %v1296 = vlaneseq
    %v1297 = vshrl.u32 %v1296, 7
    %v1298 = vsub.s32 0, %v1297
    %v1299 = vrot.slane %v1291, %v1298
    %v1300 = vadd.f32 %v1294, %v1299
    %v1301 = vmin.f32 %v1290, %v1300
    %v1302 = vld [vmem:[#allocation5 + $0x72] sm:$0x1]
    %1303 = vset.pattern.permute.xlu0 114
    %1304 = vperm.xlu0 %1303, %v45
    %v1305 = vpop.permute.xlu0 %1304
    %v1307 = vlaneseq
    %v1308 = vshrl.u32 %v1307, 7
    %v1309 = vsub.s32 0, %v1308
    %v1310 = vrot.slane %v1302, %v1309
    %v1311 = vadd.f32 %v1305, %v1310
    %v1312 = vmin.f32 %v1301, %v1311
    %v1313 = vld [vmem:[#allocation5 + $0x73] sm:$0x1]
    %1314 = vset.pattern.permute.xlu0 115
    %1315 = vperm.xlu0 %1314, %v45
    %v1316 = vpop.permute.xlu0 %1315
    %v1318 = vlaneseq
    %v1319 = vshrl.u32 %v1318, 7
    %v1320 = vsub.s32 0, %v1319
    %v1321 = vrot.slane %v1313, %v1320
    %v1322 = vadd.f32 %v1316, %v1321
    %v1323 = vmin.f32 %v1312, %v1322
    %v1324 = vld [vmem:[#allocation5 + $0x74] sm:$0x1]
    %1325 = vset.pattern.permute.xlu0 116
    %1326 = vperm.xlu0 %1325, %v45
    %v1327 = vpop.permute.xlu0 %1326
    %v1329 = vlaneseq
    %v1330 = vshrl.u32 %v1329, 7
    %v1331 = vsub.s32 0, %v1330
    %v1332 = vrot.slane %v1324, %v1331
    %v1333 = vadd.f32 %v1327, %v1332
    %v1334 = vmin.f32 %v1323, %v1333
    %v1335 = vld [vmem:[#allocation5 + $0x75] sm:$0x1]
    %1336 = vset.pattern.permute.xlu0 117
    %1337 = vperm.xlu0 %1336, %v45
    %v1338 = vpop.permute.xlu0 %1337
    %v1340 = vlaneseq
    %v1341 = vshrl.u32 %v1340, 7
    %v1342 = vsub.s32 0, %v1341
    %v1343 = vrot.slane %v1335, %v1342
    %v1344 = vadd.f32 %v1338, %v1343
    %v1345 = vmin.f32 %v1334, %v1344
    %v1346 = vld [vmem:[#allocation5 + $0x76] sm:$0x1]
    %1347 = vset.pattern.permute.xlu0 118
    %1348 = vperm.xlu0 %1347, %v45
    %v1349 = vpop.permute.xlu0 %1348
    %v1351 = vlaneseq
    %v1352 = vshrl.u32 %v1351, 7
    %v1353 = vsub.s32 0, %v1352
    %v1354 = vrot.slane %v1346, %v1353
    %v1355 = vadd.f32 %v1349, %v1354
    %v1356 = vmin.f32 %v1345, %v1355
    %v1357 = vld [vmem:[#allocation5 + $0x77] sm:$0x1]
    %1358 = vset.pattern.permute.xlu0 119
    %1359 = vperm.xlu0 %1358, %v45
    %v1360 = vpop.permute.xlu0 %1359
    %v1362 = vlaneseq
    %v1363 = vshrl.u32 %v1362, 7
    %v1364 = vsub.s32 0, %v1363
    %v1365 = vrot.slane %v1357, %v1364
    %v1366 = vadd.f32 %v1360, %v1365
    %v1367 = vmin.f32 %v1356, %v1366
    %v1368 = vld [vmem:[#allocation5 + $0x78] sm:$0x1]
    %1369 = vset.pattern.permute.xlu0 120
    %1370 = vperm.xlu0 %1369, %v45
    %v1371 = vpop.permute.xlu0 %1370
    %v1373 = vlaneseq
    %v1374 = vshrl.u32 %v1373, 7
    %v1375 = vsub.s32 0, %v1374
    %v1376 = vrot.slane %v1368, %v1375
    %v1377 = vadd.f32 %v1371, %v1376
    %v1378 = vmin.f32 %v1367, %v1377
    %v1379 = vld [vmem:[#allocation5 + $0x79] sm:$0x1]
    %1380 = vset.pattern.permute.xlu0 121
    %1381 = vperm.xlu0 %1380, %v45
    %v1382 = vpop.permute.xlu0 %1381
    %v1384 = vlaneseq
    %v1385 = vshrl.u32 %v1384, 7
    %v1386 = vsub.s32 0, %v1385
    %v1387 = vrot.slane %v1379, %v1386
    %v1388 = vadd.f32 %v1382, %v1387
    %v1389 = vmin.f32 %v1378, %v1388
    %v1390 = vld [vmem:[#allocation5 + $0x7a] sm:$0x1]
    %1391 = vset.pattern.permute.xlu0 122
    %1392 = vperm.xlu0 %1391, %v45
    %v1393 = vpop.permute.xlu0 %1392
    %v1395 = vlaneseq
    %v1396 = vshrl.u32 %v1395, 7
    %v1397 = vsub.s32 0, %v1396
    %v1398 = vrot.slane %v1390, %v1397
    %v1399 = vadd.f32 %v1393, %v1398
    %v1400 = vmin.f32 %v1389, %v1399
    %v1401 = vld [vmem:[#allocation5 + $0x7b] sm:$0x1]
    %1402 = vset.pattern.permute.xlu0 123
    %1403 = vperm.xlu0 %1402, %v45
    %v1404 = vpop.permute.xlu0 %1403
    %v1406 = vlaneseq
    %v1407 = vshrl.u32 %v1406, 7
    %v1408 = vsub.s32 0, %v1407
    %v1409 = vrot.slane %v1401, %v1408
    %v1410 = vadd.f32 %v1404, %v1409
    %v1411 = vmin.f32 %v1400, %v1410
    %v1412 = vld [vmem:[#allocation5 + $0x7c] sm:$0x1]
    %1413 = vset.pattern.permute.xlu0 124
    %1414 = vperm.xlu0 %1413, %v45
    %v1415 = vpop.permute.xlu0 %1414
    %v1417 = vlaneseq
    %v1418 = vshrl.u32 %v1417, 7
    %v1419 = vsub.s32 0, %v1418
    %v1420 = vrot.slane %v1412, %v1419
    %v1421 = vadd.f32 %v1415, %v1420
    %v1422 = vmin.f32 %v1411, %v1421
    %v1423 = vld [vmem:[#allocation5 + $0x7d] sm:$0x1]
    %1424 = vset.pattern.permute.xlu0 125
    %1425 = vperm.xlu0 %1424, %v45
    %v1426 = vpop.permute.xlu0 %1425
    %v1428 = vlaneseq
    %v1429 = vshrl.u32 %v1428, 7
    %v1430 = vsub.s32 0, %v1429
    %v1431 = vrot.slane %v1423, %v1430
    %v1432 = vadd.f32 %v1426, %v1431
    %v1433 = vmin.f32 %v1422, %v1432
    %v1434 = vld [vmem:[#allocation5 + $0x7e] sm:$0x1]
    %1435 = vset.pattern.permute.xlu0 126
    %1436 = vperm.xlu0 %1435, %v45
    %v1437 = vpop.permute.xlu0 %1436
    %v1439 = vlaneseq
    %v1440 = vshrl.u32 %v1439, 7
    %v1441 = vsub.s32 0, %v1440
    %v1442 = vrot.slane %v1434, %v1441
    %v1443 = vadd.f32 %v1437, %v1442
    %v1444 = vmin.f32 %v1433, %v1443
    %v1445 = vld [vmem:[#allocation5 + $0x7f] sm:$0x1]
    %1446 = vset.pattern.permute.xlu0 127
    %1447 = vperm.xlu0 %1446, %v45
    %v1448 = vpop.permute.xlu0 %1447
    %v1450 = vlaneseq
    %v1451 = vshrl.u32 %v1450, 7
    %v1452 = vsub.s32 0, %v1451
    %v1453 = vrot.slane %v1445, %v1452
    %v1454 = vadd.f32 %v1448, %v1453
    %v1455 = vmin.f32 %v1444, %v1454
    %1456 = vst [vmem:[#allocation7] sm:$0xff] %v1455
    // Predicated region
    $region22: #{tpu_custom_call.1} parent=1 // pred_check
      _
    $region23: #{tpu_custom_call.1} parent=1 // pred_check_branch
      %1458 = sbr.rel (0) target = $region25
    $region24: #{tpu_custom_call.1} parent=1 // pred_region
      %s1460 = ssub.s32 128, 128
      %1461 = vsyncadd [#allocation4], %s1460
      %s1463 = sshll.u32 [#allocation7], 4
      %s1464 = int_to_ptr.vmem [resolvable:$true] %s1463
      %1466 = dma.vmem_to_hbm [thread:$0]  %s1464, 128, %s2, [#allocation4]
    $region25: #{tpu_custom_call.1} parent=1 // pred_fallthru
      _
    // Predicated region
    $region26: #{tpu_custom_call.1} parent=1 // pred_check
      _
    $region27: #{tpu_custom_call.1} parent=1 // pred_check_branch
      %1468 = sbr.rel (0) target = $region29
    $region28: #{tpu_custom_call.1} parent=1 // pred_region
      %1469 = dma.done [#allocation4], 128
    $region29: #{tpu_custom_call.1} parent=1 // pred_fallthru
      _
    %1470 = vsyncpa [#allocation3], 1
    %1471 = vsyncpa [#allocation6], 1
    %1472 = vsyncpa [#allocation4], 1

</llo_original>
